<compile_context>
chip_gen: v6e
topology: v6e:2x2x1
jax: 0.10.0
libtpu: 0.0.40
codegen_flags: <defaults>
</compile_context>

<pallas_src>
import functools

import jax
import jax.numpy as jnp
from jax import lax
from jax.experimental import pallas as pl
from jax.experimental.pallas import tpu as pltpu

MAX_TILE_PIX = 32768      # pixels per grid step on the lane axis (multiple of 128)
NUM_SKEL_ITER = 10        # SoftSkeletonize(num_iter=10) hard-coded in the module


def _round_up(x, m):
    return (x + m - 1) // m * m


# ---------------------------------------------------------------------------
# Kernel 1: per-pixel cross entropy / softmax maps (class axis on sublanes)
# ---------------------------------------------------------------------------
def _ce_softmax_kernel(with_pfg, x_ref, tgt_ref, ce_ref, p1_ref, *rest):
    """x_ref   (1, C, T) f32 logits          tgt_ref (1, 1, T) i32 target class
       ce_ref  (1, 1, T) f32 -log softmax(x)[target]
       p1_ref  (1, 1, T) f32 softmax(x)[class 1]
       rest[0] (1, 1, T) f32 sum_{c>=1} softmax(x)[c]   (only when with_pfg)"""
    x = x_ref[...]
    tgt = tgt_ref[...]

    x_max = jnp.max(x, axis=1, keepdims=True)            # (1,1,T) sublane reduce
    e = jnp.exp(x - x_max)                                # (1,C,T) EUP
    denom = jnp.sum(e, axis=1, keepdims=True)             # (1,1,T)

    # reciprocal on the EUP; one Newton step keeps full f32 accuracy
    inv = pl.reciprocal(denom, approx=True)
    inv = inv * (2.0 - denom * inv)

    cls = lax.broadcasted_iota(jnp.int32, x.shape, 1)      # class index per sublane
    onehot = (cls == tgt).astype(jnp.float32)              # (1,C,T)

    x_tgt = jnp.sum(x * onehot, axis=1, keepdims=True)     # logit at target class
    ce_ref[...] = jnp.log(denom) + x_max - x_tgt
    p1_ref[...] = e[:, 1:2, :] * inv
    if with_pfg:
        rest[0][...] = (denom - e[:, 0:1, :]) * inv        # 1 - p(background)


def _ce_softmax_maps(x, y, with_pfg):
    """x (B,C,H,W) f32 logits, y (B,1,H,W) int -> (ce, p1, pfg|None), each (B,H,W)."""
    B, C, H, W = x.shape
    n_pix = H * W

    x_flat = x.reshape(B, C, n_pix).astype(jnp.float32)    # pure reshape of NCHW (no transpose)
    t_flat = y.reshape(B, 1, n_pix).astype(jnp.int32)

    if n_pix <= MAX_TILE_PIX:
        tile, n_total = n_pix, n_pix          # whole plane per step, no pad, no slice
    elif n_pix % 128 == 0:
        tile, n_total = MAX_TILE_PIX, n_pix   # ragged tail = masked partial block (OOB
        #                                       reads produce garbage only at positions
        #                                       outside the output array; no in-kernel
        #                                       reduction ever sees them)
    else:
        # Rare: huge plane whose pixel count is not a lane multiple -> one pad copy.
        n_total = _round_up(n_pix, 128)
        pad = n_total - n_pix
        x_flat = jnp.pad(x_flat, ((0, 0), (0, 0), (0, pad)))
        t_flat = jnp.pad(t_flat, ((0, 0), (0, 0), (0, pad)))
        tile = MAX_TILE_PIX

    pix_spec = pl.BlockSpec((1, 1, tile), lambda b, i: (b, 0, i))
    out_sds = jax.ShapeDtypeStruct((B, 1, n_total), jnp.float32)
    n_out = 3 if with_pfg else 2

    outs = pl.pallas_call(
        functools.partial(_ce_softmax_kernel, with_pfg),
        out_shape=(out_sds,) * n_out,
        grid_spec=pltpu.PrefetchScalarGridSpec(
            num_scalar_prefetch=0,
            grid=(B, pl.cdiv(n_total, tile)),
            in_specs=[pl.BlockSpec((1, C, tile), lambda b, i: (b, 0, i)),
                      pix_spec],
            out_specs=[pix_spec] * n_out,
        ),
        compiler_params=pltpu.CompilerParams(
            dimension_semantics=("parallel", "parallel")),
    )(x_flat, t_flat)

    if n_total != n_pix:
        outs = tuple(o[:, :, :n_pix] for o in outs)
    maps = [o.reshape(B, H, W) for o in outs]               # free reshapes
    return maps[0], maps[1], (maps[2] if with_pfg else None)


# ---------------------------------------------------------------------------
# Kernel 2: soft skeletonization + fused ce*skel reductions (per-image scalars)
# ---------------------------------------------------------------------------
def _edge_masks(shape):
    h, w = shape
    row = lax.broadcasted_iota(jnp.int32, shape, 0)
    col = lax.broadcasted_iota(jnp.int32, shape, 1)
    return (row == 0, row == h - 1, col == 0, col == w - 1)


def _neighbours(a, axis, use_roll, masks):
    """(prev, next) neighbour values along `axis`.  The missing neighbour at a
    border is replaced by the centre value, which is exactly 'ignore border'
    for the min/max pools that consume it (min(x, x) == x)."""
    if use_roll:
        first, last = (masks[0], masks[1]) if axis == 0 else (masks[2], masks[3])
        n = a.shape[axis]
        prev = jnp.where(first, a, pltpu.roll(a, 1, axis))       # value at i-1
        nxt = jnp.where(last, a, pltpu.roll(a, n - 1, axis))     # value at i+1
        return prev, nxt
    # unaligned fallback: edge-duplicating concat (no jnp.full, no sentinels)
    if axis == 0:
        prev = jnp.concatenate([a[:1, :], a[:-1, :]], axis=0)
        nxt = jnp.concatenate([a[1:, :], a[-1:, :]], axis=0)
    else:
        prev = jnp.concatenate([a[:, :1], a[:, :-1]], axis=1)
        nxt = jnp.concatenate([a[:, 1:], a[:, -1:]], axis=1)
    return prev, nxt


def _soft_erode(a, use_roll, masks):
    up, down = _neighbours(a, 0, use_roll, masks)
    left, right = _neighbours(a, 1, use_roll, masks)
    pv = jnp.minimum(a, jnp.minimum(up, down))        # 3x1 min pool
    ph = jnp.minimum(a, jnp.minimum(left, right))     # 1x3 min pool
    return jnp.minimum(pv, ph)


def _soft_dilate(a, use_roll, masks):
    up, down = _neighbours(a, 0, use_roll, masks)
    v = jnp.maximum(a, jnp.maximum(up, down))
    left, right = _neighbours(v, 1, use_roll, masks)
    return jnp.maximum(v, jnp.maximum(left, right))   # separable 3x3 max pool


def _soft_skel_plane(img, use_roll, masks):
    """SoftSkeletonize recursion on one (H, W) plane, fully resident in VMEM.
    The carry holds the already-eroded image so each iteration needs only one
    erode (shared between open() and the next iterate) and one dilate."""
    e = _soft_erode(img, use_roll, masks)
    skel = jnp.maximum(img - _soft_dilate(e, use_roll, masks), 0.0)

    def body(_, carry):
        im, sk = carry                                   # im = erode^k(img)
        e = _soft_erode(im, use_roll, masks)             # = erode^{k+1}(img)
        delta = jnp.maximum(im - _soft_dilate(e, use_roll, masks), 0.0)
        sk = sk + jnp.maximum(delta - sk * delta, 0.0)
        return e, sk

    # TODO(synk): unroll=2 may let the LLO scheduler overlap XLU rolls with VPU
    # min/max; keep the default pending a bundle-dump check (body is large).
    _, skel = lax.fori_loop(0, NUM_SKEL_ITER, body, (e, skel))
    return skel


def _skel_ce_kernel(use_roll, p1_ref, tgt_ref, ce_ref, pred_sum_ref, true_sum_ref):
    """Per image: skeletonize softmax[:,1] and onehot[:,1] (built in-kernel from
    the int target map) and emit sum(ce*skel) scalars; skeleton maps never leave
    VMEM."""
    shape = p1_ref.shape                                 # (H, W)
    masks = _edge_masks(shape) if use_roll else None     # hoisted out of the loop
    ce = ce_ref[...]

    skel_pred = _soft_skel_plane(p1_ref[...], use_roll, masks)
    skel_true = _soft_skel_plane((tgt_ref[...] == 1).astype(jnp.float32),
                                 use_roll, masks)

    pred_sum_ref[...] = jnp.sum(ce * skel_pred, keepdims=True)
    true_sum_ref[...] = jnp.sum(ce * skel_true, keepdims=True)


def _skel_ce_sums(p1, tgt, ce):
    """p1/ce (B,H,W) f32, tgt (B,H,W) i32 -> (sum_pred, sum_true), each (B,1,1)."""
    B, H, W = p1.shape
    use_roll = (H % 8 == 0) and (W % 128 == 0)           # aligned -> XLU rolls

    img_spec = pl.BlockSpec((None, H, W), lambda b: (b, 0, 0))
    sum_spec = pl.BlockSpec((None, 1, 1), lambda b: (b, 0, 0))
    sum_sds = jax.ShapeDtypeStruct((B, 1, 1), jnp.float32)

    # ~3 double-buffered input planes + ~8 live recursion temporaries; cap at
    # 64 MiB so the request is valid on v7x (v5e/v6e have 128 MiB physical).
    plane_bytes = H * W * 4
    vmem_bytes = int(min(64 << 20, max(32 << 20, 16 * plane_bytes)))

    return pl.pallas_call(
        functools.partial(_skel_ce_kernel, use_roll),
        out_shape=(sum_sds, sum_sds),
        grid_spec=pltpu.PrefetchScalarGridSpec(
            num_scalar_prefetch=0,
            grid=(B,),
            in_specs=[img_spec, img_spec, img_spec],
            out_specs=[sum_spec, sum_spec],
        ),
        compiler_params=pltpu.CompilerParams(
            dimension_semantics=("parallel",),
            vmem_limit_bytes=vmem_bytes),
    )(p1, tgt, ce)


# ---------------------------------------------------------------------------
# Full forward pass
# ---------------------------------------------------------------------------
@functools.partial(jax.jit, static_argnames=("weight_clCE",))
def dice_cl_ce_loss(x, y, weight_clCE=1.0):
    B, C, H, W = x.shape
    assert C >= 2
    need_dice = (weight_clCE != 1.0)                     # static

    ce, p1, pfg = _ce_softmax_maps(x, y, with_pfg=need_dice)
    tgt = y.reshape(B, H, W).astype(jnp.int32)

    sum_pred, sum_true = _skel_ce_sums(p1, tgt, ce)      # each (B, 1, 1)
    cl_ce = (jnp.sum(sum_true) + jnp.sum(sum_pred)) / (B * H * W)

    if not need_dice:                                    # default weight_clCE == 1
        return cl_ce

    # TODO(synk): soft_dice is not defined in the provided module; the standard
    # clDice soft_dice (foreground classes, smooth=1) is assumed here.
    fg = (tgt >= 1).astype(jnp.float32)
    inter = jnp.sum(jnp.exp(-ce) * fg)                   # sum_{c>=1} onehot*softmax
    dice = 1.0 - (2.0 * inter + 1.0) / (jnp.sum(pfg) + jnp.sum(fg) + 1.0)
    return (1.0 - weight_clCE) * dice + weight_clCE * cl_ce


# ---------------------------------------------------------------------------
# Pure-JAX reference (mirrors the PyTorch forward) for the correctness check
# ---------------------------------------------------------------------------
def _erode_ref(img):
    inf = jnp.array(jnp.inf, img.dtype)
    p1 = lax.reduce_window(img, inf, lax.min, (1, 1, 3, 1), (1, 1, 1, 1), "SAME")
    p2 = lax.reduce_window(img, inf, lax.min, (1, 1, 1, 3), (1, 1, 1, 1), "SAME")
    return jnp.minimum(p1, p2)


def _dilate_ref(img):
    ninf = jnp.array(-jnp.inf, img.dtype)
    return lax.reduce_window(img, ninf, lax.max, (1, 1, 3, 3), (1, 1, 1, 1), "SAME")


def _soft_skel_ref(img, num_iter):
    skel = jax.nn.relu(img - _dilate_ref(_erode_ref(img)))
    for _ in range(num_iter):
        img = _erode_ref(img)
        delta = jax.nn.relu(img - _dilate_ref(_erode_ref(img)))
        skel = skel + jax.nn.relu(delta - skel * delta)
    return skel


def _reference(x, y, weight_clCE=1.0, num_iter=NUM_SKEL_ITER):
    B, C, H, W = x.shape
    xf = x.astype(jnp.float32)
    y_onehot = jnp.transpose(jax.nn.one_hot(y[:, 0], C, dtype=jnp.float32), (0, 3, 1, 2))
    logp = jax.nn.log_softmax(xf, axis=1)
    cross_ent = -jnp.sum(y_onehot * logp, axis=1)            # (B, H, W)
    p = jax.nn.softmax(xf, axis=1)
    inter = jnp.sum(y_onehot[:, 1:] * p[:, 1:])
    dice = 1.0 - (2.0 * inter + 1.0) / (jnp.sum(y_onehot[:, 1:]) + jnp.sum(p[:, 1:]) + 1.0)
    skel_pred = _soft_skel_ref(p, num_iter)
    skel_true = _soft_skel_ref(y_onehot, num_iter)
    tprec = jnp.mean(cross_ent * skel_true[:, 1])
    tsens = jnp.mean(cross_ent * skel_pred[:, 1])
    cl_ce = tprec + tsens
    return (1.0 - weight_clCE) * dice + weight_clCE * cl_ce


if __name__ == "__main__":
    key = jax.random.PRNGKey(0)
    k1, k2, k3, k4 = jax.random.split(key, 4)

    # Test 1: small unaligned plane (16x16) -> edge-duplicating shift path.
    B, C, H, W = 2, 4, 16, 16
    x = jax.random.normal(k1, (B, C, H, W), dtype=jnp.float32)
    y = jax.random.randint(k2, (B, 1, H, W), 0, C).astype(jnp.int32)

    loss = jax.block_until_ready(dice_cl_ce_loss(x, y))
    ref = jax.block_until_ready(_reference(x, y))
    assert jnp.isfinite(loss), loss
    assert jnp.allclose(loss, ref, rtol=1e-4, atol=1e-5), (loss, ref)

    # Non-default weight -> exercises the dice branch and the pfg output stream.
    loss_w = jax.block_until_ready(dice_cl_ce_loss(x, y, weight_clCE=0.5))
    ref_w = jax.block_until_ready(_reference(x, y, 0.5))
    assert jnp.allclose(loss_w, ref_w, rtol=1e-4, atol=1e-5), (loss_w, ref_w)

    # Test 2: (8,128)-aligned plane -> pltpu.roll shift path.
    B2, C2, H2, W2 = 2, 3, 16, 128
    x2 = jax.random.normal(k3, (B2, C2, H2, W2), dtype=jnp.float32)
    y2 = jax.random.randint(k4, (B2, 1, H2, W2), 0, C2).astype(jnp.int32)

    loss2 = jax.block_until_ready(dice_cl_ce_loss(x2, y2))
    ref2 = jax.block_until_ready(_reference(x2, y2))
    assert jnp.allclose(loss2, ref2, rtol=1e-4, atol=1e-5), (loss2, ref2)

    print("KERNEL_OK")
</pallas_src>

<mosaic_0001>
module attributes {stable_mosaic.version = 11 : i64} {
  func.func @_ce_softmax_kernel(%arg0: i32, %arg1: i32, %arg2: memref<1x4x256xf32, #tpu.memory_space<vmem>>, %arg3: memref<1x1x256xi32, #tpu.memory_space<vmem>>, %arg4: memref<1x1x256xf32, #tpu.memory_space<vmem>>, %arg5: memref<1x1x256xf32, #tpu.memory_space<vmem>>) attributes {dimension_semantics = [#tpu.dimension_semantics<parallel>, #tpu.dimension_semantics<parallel>], iteration_bounds = array<i64: 2, 1>, scalar_prefetch = 0 : i64, scratch_operands = 0 : i64, tpu.core_type = #tpu.core_type<tc>, window_params = [{transform_indices = @transform_0, window_bounds = array<i64: 1, 4, 256>}, {transform_indices = @transform_1, window_bounds = array<i64: 1, 1, 256>}, {transform_indices = @transform_2, window_bounds = array<i64: 1, 1, 256>}, {transform_indices = @transform_3, window_bounds = array<i64: 1, 1, 256>}]} {
    %c0 = arith.constant 0 : index
    %c0_0 = arith.constant 0 : index
    %c0_1 = arith.constant 0 : index
    %0 = vector.load %arg2[%c0, %c0_0, %c0_1] : memref<1x4x256xf32, #tpu.memory_space<vmem>>, vector<1x4x256xf32>
    %c0_2 = arith.constant 0 : index
    %c0_3 = arith.constant 0 : index
    %c0_4 = arith.constant 0 : index
    %1 = vector.load %arg3[%c0_2, %c0_3, %c0_4] : memref<1x1x256xi32, #tpu.memory_space<vmem>>, vector<1x1x256xi32>
    %cst = arith.constant dense<0xFF800000> : vector<1x256xf32>
    %2 = vector.multi_reduction <maximumf>, %0, %cst [1] : vector<1x4x256xf32> to vector<1x256xf32>
    %3 = vector.shape_cast %2 : vector<1x256xf32> to vector<1x1x256xf32>
    %4 = vector.broadcast %3 : vector<1x1x256xf32> to vector<1x4x256xf32>
    %5 = arith.subf %0, %4 : vector<1x4x256xf32>
    %6 = math.exp %5 : vector<1x4x256xf32>
    %cst_5 = arith.constant dense<0.000000e+00> : vector<1x256xf32>
    %7 = vector.multi_reduction <add>, %6, %cst_5 [1] : vector<1x4x256xf32> to vector<1x256xf32>
    %8 = vector.shape_cast %7 : vector<1x256xf32> to vector<1x1x256xf32>
    %9 = tpu.reciprocal %8 {approx = true} : vector<1x1x256xf32> -> vector<1x1x256xf32>
    %10 = arith.mulf %8, %9 : vector<1x1x256xf32>
    %cst_6 = arith.constant 2.000000e+00 : f32
    %11 = vector.broadcast %cst_6 : f32 to vector<1x1x256xf32>
    %12 = arith.subf %11, %10 : vector<1x1x256xf32>
    %13 = arith.mulf %9, %12 : vector<1x1x256xf32>
    %14 = tpu.iota {dimensions = array<i32: 1>} : vector<1x4x256xi32>
    %15 = vector.broadcast %1 : vector<1x1x256xi32> to vector<1x4x256xi32>
    %16 = arith.cmpi eq, %14, %15 : vector<1x4x256xi32>
    %17 = arith.extui %16 : vector<1x4x256xi1> to vector<1x4x256xi32>
    %18 = arith.sitofp %17 : vector<1x4x256xi32> to vector<1x4x256xf32>
    %19 = arith.mulf %0, %18 : vector<1x4x256xf32>
    %cst_7 = arith.constant dense<0.000000e+00> : vector<1x256xf32>
    %20 = vector.multi_reduction <add>, %19, %cst_7 [1] : vector<1x4x256xf32> to vector<1x256xf32>
    %21 = vector.shape_cast %20 : vector<1x256xf32> to vector<1x1x256xf32>
    %22 = math.log %8 : vector<1x1x256xf32>
    %23 = arith.addf %22, %3 : vector<1x1x256xf32>
    %24 = arith.subf %23, %21 : vector<1x1x256xf32>
    %c0_8 = arith.constant 0 : index
    %c0_9 = arith.constant 0 : index
    %c0_10 = arith.constant 0 : index
    %25 = vector.load %arg4[%c0_8, %c0_9, %c0_10] : memref<1x1x256xf32, #tpu.memory_space<vmem>>, vector<1x1x256xf32>
    tpu.vector_store %arg4[%c0_8, %c0_9, %c0_10], %24 {strides = array<i32>} : memref<1x1x256xf32, #tpu.memory_space<vmem>>, vector<1x1x256xf32>,
    %26 = vector.extract_strided_slice %6 {offsets = [0, 1, 0], sizes = [1, 1, 256], strides = [1, 1, 1]} : vector<1x4x256xf32> to vector<1x1x256xf32>
    %27 = arith.mulf %26, %13 : vector<1x1x256xf32>
    %c0_11 = arith.constant 0 : index
    %c0_12 = arith.constant 0 : index
    %c0_13 = arith.constant 0 : index
    %28 = vector.load %arg5[%c0_11, %c0_12, %c0_13] : memref<1x1x256xf32, #tpu.memory_space<vmem>>, vector<1x1x256xf32>
    tpu.vector_store %arg5[%c0_11, %c0_12, %c0_13], %27 {strides = array<i32>} : memref<1x1x256xf32, #tpu.memory_space<vmem>>, vector<1x1x256xf32>,
    return
  }
  func.func @transform_0(%arg0: i32, %arg1: i32) -> (i32, i32, i32) {
    %c0_i32 = arith.constant 0 : i32
    %c0_i32_0 = arith.constant 0 : i32
    return %arg0, %c0_i32, %arg1 : i32, i32, i32
  }
  func.func @transform_1(%arg0: i32, %arg1: i32) -> (i32, i32, i32) {
    %c0_i32 = arith.constant 0 : i32
    %c0_i32_0 = arith.constant 0 : i32
    return %arg0, %c0_i32, %arg1 : i32, i32, i32
  }
  func.func @transform_2(%arg0: i32, %arg1: i32) -> (i32, i32, i32) {
    %c0_i32 = arith.constant 0 : i32
    %c0_i32_0 = arith.constant 0 : i32
    return %arg0, %c0_i32, %arg1 : i32, i32, i32
  }
  func.func @transform_3(%arg0: i32, %arg1: i32) -> (i32, i32, i32) {
    %c0_i32 = arith.constant 0 : i32
    %c0_i32_0 = arith.constant 0 : i32
    return %arg0, %c0_i32, %arg1 : i32, i32, i32
  }
}

module attributes {stable_mosaic.version = 11 : i64} {
  func.func @_skel_ce_kernel(%arg0: i32, %arg1: memref<1x16x16xf32, #tpu.memory_space<vmem>>, %arg2: memref<1x16x16xi32, #tpu.memory_space<vmem>>, %arg3: memref<1x16x16xf32, #tpu.memory_space<vmem>>, %arg4: memref<1x1x1xf32, #tpu.memory_space<vmem>>, %arg5: memref<1x1x1xf32, #tpu.memory_space<vmem>>) attributes {dimension_semantics = [#tpu.dimension_semantics<parallel>], iteration_bounds = array<i64: 2>, scalar_prefetch = 0 : i64, scratch_operands = 0 : i64, tpu.core_type = #tpu.core_type<tc>, window_params = [{transform_indices = @transform_0, window_bounds = array<i64: 1, 16, 16>}, {transform_indices = @transform_1, window_bounds = array<i64: 1, 16, 16>}, {transform_indices = @transform_2, window_bounds = array<i64: 1, 16, 16>}, {transform_indices = @transform_3, window_bounds = array<i64: 1, 1, 1>}, {transform_indices = @transform_4, window_bounds = array<i64: 1, 1, 1>}]} {
    %c0 = arith.constant 0 : index
    %c0_0 = arith.constant 0 : index
    %c0_1 = arith.constant 0 : index
    %0 = vector.load %arg3[%c0, %c0_0, %c0_1] : memref<1x16x16xf32, #tpu.memory_space<vmem>>, vector<1x16x16xf32>
    %1 = vector.shape_cast %0 : vector<1x16x16xf32> to vector<16x16xf32>
    %c0_2 = arith.constant 0 : index
    %c0_3 = arith.constant 0 : index
    %c0_4 = arith.constant 0 : index
    %2 = vector.load %arg1[%c0_2, %c0_3, %c0_4] : memref<1x16x16xf32, #tpu.memory_space<vmem>>, vector<1x16x16xf32>
    %3 = vector.shape_cast %2 : vector<1x16x16xf32> to vector<16x16xf32>
    %4 = vector.extract_strided_slice %3 {offsets = [0, 0], sizes = [1, 16], strides = [1, 1]} : vector<16x16xf32> to vector<1x16xf32>
    %5 = vector.extract_strided_slice %3 {offsets = [0, 0], sizes = [15, 16], strides = [1, 1]} : vector<16x16xf32> to vector<15x16xf32>
    %6 = tpu.concatenate %4, %5 in 0 : vector<1x16xf32>, vector<15x16xf32> -> vector<16x16xf32>
    %7 = vector.extract_strided_slice %3 {offsets = [1, 0], sizes = [15, 16], strides = [1, 1]} : vector<16x16xf32> to vector<15x16xf32>
    %8 = vector.extract_strided_slice %3 {offsets = [15, 0], sizes = [1, 16], strides = [1, 1]} : vector<16x16xf32> to vector<1x16xf32>
    %9 = tpu.concatenate %7, %8 in 0 : vector<15x16xf32>, vector<1x16xf32> -> vector<16x16xf32>
    %10 = vector.extract_strided_slice %3 {offsets = [0, 0], sizes = [16, 1], strides = [1, 1]} : vector<16x16xf32> to vector<16x1xf32>
    %11 = vector.extract_strided_slice %3 {offsets = [0, 0], sizes = [16, 15], strides = [1, 1]} : vector<16x16xf32> to vector<16x15xf32>
    %12 = tpu.concatenate %10, %11 in 1 : vector<16x1xf32>, vector<16x15xf32> -> vector<16x16xf32>
    %13 = vector.extract_strided_slice %3 {offsets = [0, 1], sizes = [16, 15], strides = [1, 1]} : vector<16x16xf32> to vector<16x15xf32>
    %14 = vector.extract_strided_slice %3 {offsets = [0, 15], sizes = [16, 1], strides = [1, 1]} : vector<16x16xf32> to vector<16x1xf32>
    %15 = tpu.concatenate %13, %14 in 1 : vector<16x15xf32>, vector<16x1xf32> -> vector<16x16xf32>
    %16 = arith.minimumf %6, %9 : vector<16x16xf32>
    %17 = arith.minimumf %3, %16 : vector<16x16xf32>
    %18 = arith.minimumf %12, %15 : vector<16x16xf32>
    %19 = arith.minimumf %3, %18 : vector<16x16xf32>
    %20 = arith.minimumf %17, %19 : vector<16x16xf32>
    %21 = vector.extract_strided_slice %20 {offsets = [0, 0], sizes = [1, 16], strides = [1, 1]} : vector<16x16xf32> to vector<1x16xf32>
    %22 = vector.extract_strided_slice %20 {offsets = [0, 0], sizes = [15, 16], strides = [1, 1]} : vector<16x16xf32> to vector<15x16xf32>
    %23 = tpu.concatenate %21, %22 in 0 : vector<1x16xf32>, vector<15x16xf32> -> vector<16x16xf32>
    %24 = vector.extract_strided_slice %20 {offsets = [1, 0], sizes = [15, 16], strides = [1, 1]} : vector<16x16xf32> to vector<15x16xf32>
    %25 = vector.extract_strided_slice %20 {offsets = [15, 0], sizes = [1, 16], strides = [1, 1]} : vector<16x16xf32> to vector<1x16xf32>
    %26 = tpu.concatenate %24, %25 in 0 : vector<15x16xf32>, vector<1x16xf32> -> vector<16x16xf32>
    %27 = arith.maximumf %23, %26 : vector<16x16xf32>
    %28 = arith.maximumf %20, %27 : vector<16x16xf32>
    %29 = vector.extract_strided_slice %28 {offsets = [0, 0], sizes = [16, 1], strides = [1, 1]} : vector<16x16xf32> to vector<16x1xf32>
    %30 = vector.extract_strided_slice %28 {offsets = [0, 0], sizes = [16, 15], strides = [1, 1]} : vector<16x16xf32> to vector<16x15xf32>
    %31 = tpu.concatenate %29, %30 in 1 : vector<16x1xf32>, vector<16x15xf32> -> vector<16x16xf32>
    %32 = vector.extract_strided_slice %28 {offsets = [0, 1], sizes = [16, 15], strides = [1, 1]} : vector<16x16xf32> to vector<16x15xf32>
    %33 = vector.extract_strided_slice %28 {offsets = [0, 15], sizes = [16, 1], strides = [1, 1]} : vector<16x16xf32> to vector<16x1xf32>
    %34 = tpu.concatenate %32, %33 in 1 : vector<16x15xf32>, vector<16x1xf32> -> vector<16x16xf32>
    %35 = arith.maximumf %31, %34 : vector<16x16xf32>
    %36 = arith.maximumf %28, %35 : vector<16x16xf32>
    %37 = arith.subf %3, %36 : vector<16x16xf32>
    %cst = arith.constant 0.000000e+00 : f32
    %38 = vector.broadcast %cst : f32 to vector<16x16xf32>
    %39 = arith.maximumf %37, %38 : vector<16x16xf32>
    %c0_i32 = arith.constant 0 : i32
    %c10_i32 = arith.constant 10 : i32
    %40 = arith.addi %c0_i32, %c10_i32 : i32
    %c1_i32 = arith.constant 1 : i32
    %41:2 = scf.for %arg6 = %c0_i32 to %40 step %c1_i32 iter_args(%arg7 = %20, %arg8 = %39) -> (vector<16x16xf32>, vector<16x16xf32>)  : i32 {
      %104 = vector.extract_strided_slice %arg7 {offsets = [0, 0], sizes = [1, 16], strides = [1, 1]} : vector<16x16xf32> to vector<1x16xf32>
      %105 = vector.extract_strided_slice %arg7 {offsets = [0, 0], sizes = [15, 16], strides = [1, 1]} : vector<16x16xf32> to vector<15x16xf32>
      %106 = tpu.concatenate %104, %105 in 0 : vector<1x16xf32>, vector<15x16xf32> -> vector<16x16xf32>
      %107 = vector.extract_strided_slice %arg7 {offsets = [1, 0], sizes = [15, 16], strides = [1, 1]} : vector<16x16xf32> to vector<15x16xf32>
      %108 = vector.extract_strided_slice %arg7 {offsets = [15, 0], sizes = [1, 16], strides = [1, 1]} : vector<16x16xf32> to vector<1x16xf32>
      %109 = tpu.concatenate %107, %108 in 0 : vector<15x16xf32>, vector<1x16xf32> -> vector<16x16xf32>
      %110 = vector.extract_strided_slice %arg7 {offsets = [0, 0], sizes = [16, 1], strides = [1, 1]} : vector<16x16xf32> to vector<16x1xf32>
      %111 = vector.extract_strided_slice %arg7 {offsets = [0, 0], sizes = [16, 15], strides = [1, 1]} : vector<16x16xf32> to vector<16x15xf32>
      %112 = tpu.concatenate %110, %111 in 1 : vector<16x1xf32>, vector<16x15xf32> -> vector<16x16xf32>
      %113 = vector.extract_strided_slice %arg7 {offsets = [0, 1], sizes = [16, 15], strides = [1, 1]} : vector<16x16xf32> to vector<16x15xf32>
      %114 = vector.extract_strided_slice %arg7 {offsets = [0, 15], sizes = [16, 1], strides = [1, 1]} : vector<16x16xf32> to vector<16x1xf32>
      %115 = tpu.concatenate %113, %114 in 1 : vector<16x15xf32>, vector<16x1xf32> -> vector<16x16xf32>
      %116 = arith.minimumf %106, %109 : vector<16x16xf32>
      %117 = arith.minimumf %arg7, %116 : vector<16x16xf32>
      %118 = arith.minimumf %112, %115 : vector<16x16xf32>
      %119 = arith.minimumf %arg7, %118 : vector<16x16xf32>
      %120 = arith.minimumf %117, %119 : vector<16x16xf32>
      %121 = vector.extract_strided_slice %120 {offsets = [0, 0], sizes = [1, 16], strides = [1, 1]} : vector<16x16xf32> to vector<1x16xf32>
      %122 = vector.extract_strided_slice %120 {offsets = [0, 0], sizes = [15, 16], strides = [1, 1]} : vector<16x16xf32> to vector<15x16xf32>
      %123 = tpu.concatenate %121, %122 in 0 : vector<1x16xf32>, vector<15x16xf32> -> vector<16x16xf32>
      %124 = vector.extract_strided_slice %120 {offsets = [1, 0], sizes = [15, 16], strides = [1, 1]} : vector<16x16xf32> to vector<15x16xf32>
      %125 = vector.extract_strided_slice %120 {offsets = [15, 0], sizes = [1, 16], strides = [1, 1]} : vector<16x16xf32> to vector<1x16xf32>
      %126 = tpu.concatenate %124, %125 in 0 : vector<15x16xf32>, vector<1x16xf32> -> vector<16x16xf32>
      %127 = arith.maximumf %123, %126 : vector<16x16xf32>
      %128 = arith.maximumf %120, %127 : vector<16x16xf32>
      %129 = vector.extract_strided_slice %128 {offsets = [0, 0], sizes = [16, 1], strides = [1, 1]} : vector<16x16xf32> to vector<16x1xf32>
      %130 = vector.extract_strided_slice %128 {offsets = [0, 0], sizes = [16, 15], strides = [1, 1]} : vector<16x16xf32> to vector<16x15xf32>
      %131 = tpu.concatenate %129, %130 in 1 : vector<16x1xf32>, vector<16x15xf32> -> vector<16x16xf32>
      %132 = vector.extract_strided_slice %128 {offsets = [0, 1], sizes = [16, 15], strides = [1, 1]} : vector<16x16xf32> to vector<16x15xf32>
      %133 = vector.extract_strided_slice %128 {offsets = [0, 15], sizes = [16, 1], strides = [1, 1]} : vector<16x16xf32> to vector<16x1xf32>
      %134 = tpu.concatenate %132, %133 in 1 : vector<16x15xf32>, vector<16x1xf32> -> vector<16x16xf32>
      %135 = arith.maximumf %131, %134 : vector<16x16xf32>
      %136 = arith.maximumf %128, %135 : vector<16x16xf32>
      %137 = arith.subf %arg7, %136 : vector<16x16xf32>
      %cst_21 = arith.constant 0.000000e+00 : f32
      %138 = vector.broadcast %cst_21 : f32 to vector<16x16xf32>
      %139 = arith.maximumf %137, %138 : vector<16x16xf32>
      %140 = arith.mulf %arg8, %139 : vector<16x16xf32>
      %141 = arith.subf %139, %140 : vector<16x16xf32>
      %cst_22 = arith.constant 0.000000e+00 : f32
      %142 = vector.broadcast %cst_22 : f32 to vector<16x16xf32>
      %143 = arith.maximumf %141, %142 : vector<16x16xf32>
      %144 = arith.addf %arg8, %143 : vector<16x16xf32>
      scf.yield %120, %144 : vector<16x16xf32>, vector<16x16xf32>
    }
    %c0_5 = arith.constant 0 : index
    %c0_6 = arith.constant 0 : index
    %c0_7 = arith.constant 0 : index
    %42 = vector.load %arg2[%c0_5, %c0_6, %c0_7] : memref<1x16x16xi32, #tpu.memory_space<vmem>>, vector<1x16x16xi32>
    %43 = vector.shape_cast %42 : vector<1x16x16xi32> to vector<16x16xi32>
    %c1_i32_8 = arith.constant 1 : i32
    %44 = vector.broadcast %c1_i32_8 : i32 to vector<16x16xi32>
    %45 = arith.cmpi eq, %43, %44 : vector<16x16xi32>
    %46 = arith.extui %45 : vector<16x16xi1> to vector<16x16xi32>
    %47 = arith.sitofp %46 : vector<16x16xi32> to vector<16x16xf32>
    %48 = vector.extract_strided_slice %47 {offsets = [0, 0], sizes = [1, 16], strides = [1, 1]} : vector<16x16xf32> to vector<1x16xf32>
    %49 = vector.extract_strided_slice %47 {offsets = [0, 0], sizes = [15, 16], strides = [1, 1]} : vector<16x16xf32> to vector<15x16xf32>
    %50 = tpu.concatenate %48, %49 in 0 : vector<1x16xf32>, vector<15x16xf32> -> vector<16x16xf32>
    %51 = vector.extract_strided_slice %47 {offsets = [1, 0], sizes = [15, 16], strides = [1, 1]} : vector<16x16xf32> to vector<15x16xf32>
    %52 = vector.extract_strided_slice %47 {offsets = [15, 0], sizes = [1, 16], strides = [1, 1]} : vector<16x16xf32> to vector<1x16xf32>
    %53 = tpu.concatenate %51, %52 in 0 : vector<15x16xf32>, vector<1x16xf32> -> vector<16x16xf32>
    %54 = vector.extract_strided_slice %47 {offsets = [0, 0], sizes = [16, 1], strides = [1, 1]} : vector<16x16xf32> to vector<16x1xf32>
    %55 = vector.extract_strided_slice %47 {offsets = [0, 0], sizes = [16, 15], strides = [1, 1]} : vector<16x16xf32> to vector<16x15xf32>
    %56 = tpu.concatenate %54, %55 in 1 : vector<16x1xf32>, vector<16x15xf32> -> vector<16x16xf32>
    %57 = vector.extract_strided_slice %47 {offsets = [0, 1], sizes = [16, 15], strides = [1, 1]} : vector<16x16xf32> to vector<16x15xf32>
    %58 = vector.extract_strided_slice %47 {offsets = [0, 15], sizes = [16, 1], strides = [1, 1]} : vector<16x16xf32> to vector<16x1xf32>
    %59 = tpu.concatenate %57, %58 in 1 : vector<16x15xf32>, vector<16x1xf32> -> vector<16x16xf32>
    %60 = arith.minimumf %50, %53 : vector<16x16xf32>
    %61 = arith.minimumf %47, %60 : vector<16x16xf32>
    %62 = arith.minimumf %56, %59 : vector<16x16xf32>
    %63 = arith.minimumf %47, %62 : vector<16x16xf32>
    %64 = arith.minimumf %61, %63 : vector<16x16xf32>
    %65 = vector.extract_strided_slice %64 {offsets = [0, 0], sizes = [1, 16], strides = [1, 1]} : vector<16x16xf32> to vector<1x16xf32>
    %66 = vector.extract_strided_slice %64 {offsets = [0, 0], sizes = [15, 16], strides = [1, 1]} : vector<16x16xf32> to vector<15x16xf32>
    %67 = tpu.concatenate %65, %66 in 0 : vector<1x16xf32>, vector<15x16xf32> -> vector<16x16xf32>
    %68 = vector.extract_strided_slice %64 {offsets = [1, 0], sizes = [15, 16], strides = [1, 1]} : vector<16x16xf32> to vector<15x16xf32>
    %69 = vector.extract_strided_slice %64 {offsets = [15, 0], sizes = [1, 16], strides = [1, 1]} : vector<16x16xf32> to vector<1x16xf32>
    %70 = tpu.concatenate %68, %69 in 0 : vector<15x16xf32>, vector<1x16xf32> -> vector<16x16xf32>
    %71 = arith.maximumf %67, %70 : vector<16x16xf32>
    %72 = arith.maximumf %64, %71 : vector<16x16xf32>
    %73 = vector.extract_strided_slice %72 {offsets = [0, 0], sizes = [16, 1], strides = [1, 1]} : vector<16x16xf32> to vector<16x1xf32>
    %74 = vector.extract_strided_slice %72 {offsets = [0, 0], sizes = [16, 15], strides = [1, 1]} : vector<16x16xf32> to vector<16x15xf32>
    %75 = tpu.concatenate %73, %74 in 1 : vector<16x1xf32>, vector<16x15xf32> -> vector<16x16xf32>
    %76 = vector.extract_strided_slice %72 {offsets = [0, 1], sizes = [16, 15], strides = [1, 1]} : vector<16x16xf32> to vector<16x15xf32>
    %77 = vector.extract_strided_slice %72 {offsets = [0, 15], sizes = [16, 1], strides = [1, 1]} : vector<16x16xf32> to vector<16x1xf32>
    %78 = tpu.concatenate %76, %77 in 1 : vector<16x15xf32>, vector<16x1xf32> -> vector<16x16xf32>
    %79 = arith.maximumf %75, %78 : vector<16x16xf32>
    %80 = arith.maximumf %72, %79 : vector<16x16xf32>
    %81 = arith.subf %47, %80 : vector<16x16xf32>
    %cst_9 = arith.constant 0.000000e+00 : f32
    %82 = vector.broadcast %cst_9 : f32 to vector<16x16xf32>
    %83 = arith.maximumf %81, %82 : vector<16x16xf32>
    %c0_i32_10 = arith.constant 0 : i32
    %c10_i32_11 = arith.constant 10 : i32
    %84 = arith.addi %c0_i32_10, %c10_i32_11 : i32
    %c1_i32_12 = arith.constant 1 : i32
    %85:2 = scf.for %arg6 = %c0_i32_10 to %84 step %c1_i32_12 iter_args(%arg7 = %64, %arg8 = %83) -> (vector<16x16xf32>, vector<16x16xf32>)  : i32 {
      %104 = vector.extract_strided_slice %arg7 {offsets = [0, 0], sizes = [1, 16], strides = [1, 1]} : vector<16x16xf32> to vector<1x16xf32>
      %105 = vector.extract_strided_slice %arg7 {offsets = [0, 0], sizes = [15, 16], strides = [1, 1]} : vector<16x16xf32> to vector<15x16xf32>
      %106 = tpu.concatenate %104, %105 in 0 : vector<1x16xf32>, vector<15x16xf32> -> vector<16x16xf32>
      %107 = vector.extract_strided_slice %arg7 {offsets = [1, 0], sizes = [15, 16], strides = [1, 1]} : vector<16x16xf32> to vector<15x16xf32>
      %108 = vector.extract_strided_slice %arg7 {offsets = [15, 0], sizes = [1, 16], strides = [1, 1]} : vector<16x16xf32> to vector<1x16xf32>
      %109 = tpu.concatenate %107, %108 in 0 : vector<15x16xf32>, vector<1x16xf32> -> vector<16x16xf32>
      %110 = vector.extract_strided_slice %arg7 {offsets = [0, 0], sizes = [16, 1], strides = [1, 1]} : vector<16x16xf32> to vector<16x1xf32>
      %111 = vector.extract_strided_slice %arg7 {offsets = [0, 0], sizes = [16, 15], strides = [1, 1]} : vector<16x16xf32> to vector<16x15xf32>
      %112 = tpu.concatenate %110, %111 in 1 : vector<16x1xf32>, vector<16x15xf32> -> vector<16x16xf32>
      %113 = vector.extract_strided_slice %arg7 {offsets = [0, 1], sizes = [16, 15], strides = [1, 1]} : vector<16x16xf32> to vector<16x15xf32>
      %114 = vector.extract_strided_slice %arg7 {offsets = [0, 15], sizes = [16, 1], strides = [1, 1]} : vector<16x16xf32> to vector<16x1xf32>
      %115 = tpu.concatenate %113, %114 in 1 : vector<16x15xf32>, vector<16x1xf32> -> vector<16x16xf32>
      %116 = arith.minimumf %106, %109 : vector<16x16xf32>
      %117 = arith.minimumf %arg7, %116 : vector<16x16xf32>
      %118 = arith.minimumf %112, %115 : vector<16x16xf32>
      %119 = arith.minimumf %arg7, %118 : vector<16x16xf32>
      %120 = arith.minimumf %117, %119 : vector<16x16xf32>
      %121 = vector.extract_strided_slice %120 {offsets = [0, 0], sizes = [1, 16], strides = [1, 1]} : vector<16x16xf32> to vector<1x16xf32>
      %122 = vector.extract_strided_slice %120 {offsets = [0, 0], sizes = [15, 16], strides = [1, 1]} : vector<16x16xf32> to vector<15x16xf32>
      %123 = tpu.concatenate %121, %122 in 0 : vector<1x16xf32>, vector<15x16xf32> -> vector<16x16xf32>
      %124 = vector.extract_strided_slice %120 {offsets = [1, 0], sizes = [15, 16], strides = [1, 1]} : vector<16x16xf32> to vector<15x16xf32>
      %125 = vector.extract_strided_slice %120 {offsets = [15, 0], sizes = [1, 16], strides = [1, 1]} : vector<16x16xf32> to vector<1x16xf32>
      %126 = tpu.concatenate %124, %125 in 0 : vector<15x16xf32>, vector<1x16xf32> -> vector<16x16xf32>
      %127 = arith.maximumf %123, %126 : vector<16x16xf32>
      %128 = arith.maximumf %120, %127 : vector<16x16xf32>
      %129 = vector.extract_strided_slice %128 {offsets = [0, 0], sizes = [16, 1], strides = [1, 1]} : vector<16x16xf32> to vector<16x1xf32>
      %130 = vector.extract_strided_slice %128 {offsets = [0, 0], sizes = [16, 15], strides = [1, 1]} : vector<16x16xf32> to vector<16x15xf32>
      %131 = tpu.concatenate %129, %130 in 1 : vector<16x1xf32>, vector<16x15xf32> -> vector<16x16xf32>
      %132 = vector.extract_strided_slice %128 {offsets = [0, 1], sizes = [16, 15], strides = [1, 1]} : vector<16x16xf32> to vector<16x15xf32>
      %133 = vector.extract_strided_slice %128 {offsets = [0, 15], sizes = [16, 1], strides = [1, 1]} : vector<16x16xf32> to vector<16x1xf32>
      %134 = tpu.concatenate %132, %133 in 1 : vector<16x15xf32>, vector<16x1xf32> -> vector<16x16xf32>
      %135 = arith.maximumf %131, %134 : vector<16x16xf32>
      %136 = arith.maximumf %128, %135 : vector<16x16xf32>
      %137 = arith.subf %arg7, %136 : vector<16x16xf32>
      %cst_21 = arith.constant 0.000000e+00 : f32
      %138 = vector.broadcast %cst_21 : f32 to vector<16x16xf32>
      %139 = arith.maximumf %137, %138 : vector<16x16xf32>
      %140 = arith.mulf %arg8, %139 : vector<16x16xf32>
      %141 = arith.subf %139, %140 : vector<16x16xf32>
      %cst_22 = arith.constant 0.000000e+00 : f32
      %142 = vector.broadcast %cst_22 : f32 to vector<16x16xf32>
      %143 = arith.maximumf %141, %142 : vector<16x16xf32>
      %144 = arith.addf %arg8, %143 : vector<16x16xf32>
      scf.yield %120, %144 : vector<16x16xf32>, vector<16x16xf32>
    }
    %86 = arith.mulf %1, %41#1 : vector<16x16xf32>
    %87 = vector.shape_cast %86 : vector<16x16xf32> to vector<1x16x16xf32>
    %cst_13 = arith.constant dense<0.000000e+00> : vector<1xf32>
    %88 = vector.multi_reduction <add>, %87, %cst_13 [1, 2] : vector<1x16x16xf32> to vector<1xf32>
    %89 = vector.shape_cast %88 : vector<1xf32> to vector<1x1x1xf32>
    %90 = vector.extract %89[0, 0, 0] : f32 from vector<1x1x1xf32>
    %91 = vector.broadcast %90 : f32 to vector<1x1xf32>
    %c0_14 = arith.constant 0 : index
    %c0_15 = arith.constant 0 : index
    %c0_16 = arith.constant 0 : index
    %92 = vector.load %arg4[%c0_14, %c0_15, %c0_16] : memref<1x1x1xf32, #tpu.memory_space<vmem>>, vector<1x1x1xf32>
    %93 = vector.shape_cast %92 : vector<1x1x1xf32> to vector<1x1xf32>
    %94 = vector.shape_cast %91 : vector<1x1xf32> to vector<1x1x1xf32>
    tpu.vector_store %arg4[%c0_14, %c0_15, %c0_16], %94 {strides = array<i32>} : memref<1x1x1xf32, #tpu.memory_space<vmem>>, vector<1x1x1xf32>,
    %95 = arith.mulf %1, %85#1 : vector<16x16xf32>
    %96 = vector.shape_cast %95 : vector<16x16xf32> to vector<1x16x16xf32>
    %cst_17 = arith.constant dense<0.000000e+00> : vector<1xf32>
    %97 = vector.multi_reduction <add>, %96, %cst_17 [1, 2] : vector<1x16x16xf32> to vector<1xf32>
    %98 = vector.shape_cast %97 : vector<1xf32> to vector<1x1x1xf32>
    %99 = vector.extract %98[0, 0, 0] : f32 from vector<1x1x1xf32>
    %100 = vector.broadcast %99 : f32 to vector<1x1xf32>
    %c0_18 = arith.constant 0 : index
    %c0_19 = arith.constant 0 : index
    %c0_20 = arith.constant 0 : index
    %101 = vector.load %arg5[%c0_18, %c0_19, %c0_20] : memref<1x1x1xf32, #tpu.memory_space<vmem>>, vector<1x1x1xf32>
    %102 = vector.shape_cast %101 : vector<1x1x1xf32> to vector<1x1xf32>
    %103 = vector.shape_cast %100 : vector<1x1xf32> to vector<1x1x1xf32>
    tpu.vector_store %arg5[%c0_18, %c0_19, %c0_20], %103 {strides = array<i32>} : memref<1x1x1xf32, #tpu.memory_space<vmem>>, vector<1x1x1xf32>,
    return
  }
  func.func @transform_0(%arg0: i32) -> (i32, i32, i32) {
    %c0_i32 = arith.constant 0 : i32
    %c0_i32_0 = arith.constant 0 : i32
    %c0_i32_1 = arith.constant 0 : i32
    return %arg0, %c0_i32, %c0_i32_0 : i32, i32, i32
  }
  func.func @transform_1(%arg0: i32) -> (i32, i32, i32) {
    %c0_i32 = arith.constant 0 : i32
    %c0_i32_0 = arith.constant 0 : i32
    %c0_i32_1 = arith.constant 0 : i32
    return %arg0, %c0_i32, %c0_i32_0 : i32, i32, i32
  }
  func.func @transform_2(%arg0: i32) -> (i32, i32, i32) {
    %c0_i32 = arith.constant 0 : i32
    %c0_i32_0 = arith.constant 0 : i32
    %c0_i32_1 = arith.constant 0 : i32
    return %arg0, %c0_i32, %c0_i32_0 : i32, i32, i32
  }
  func.func @transform_3(%arg0: i32) -> (i32, i32, i32) {
    %c0_i32 = arith.constant 0 : i32
    %c0_i32_0 = arith.constant 0 : i32
    %c0_i32_1 = arith.constant 0 : i32
    return %arg0, %c0_i32, %c0_i32_0 : i32, i32, i32
  }
  func.func @transform_4(%arg0: i32) -> (i32, i32, i32) {
    %c0_i32 = arith.constant 0 : i32
    %c0_i32_0 = arith.constant 0 : i32
    %c0_i32_1 = arith.constant 0 : i32
    return %arg0, %c0_i32, %c0_i32_0 : i32, i32, i32
  }
}

</mosaic_0001>

<llo_original>
// kernel: dice_cl_ce_loss.2
$region0: #{dice_cl_ce_loss.2}
  #allocation0 [shape = 'u32[]', space=smem, size = 0x4, offset = 0x4, fixed_abs, tag = 'smem constant byte address 0x4 - core index']
  #allocation1 [shape = 'u32[144,128]{1,0:T(1,128)}', space=vmem, size = 0x12000, scoped, tag = 'internal scratch']
  %s0 = inlined_call_operand.vmem [shape: f32[2,4,256], index: 0, kind: input, shape index: {}]
  %s1 = inlined_call_operand.vmem [shape: s32[2,1,256], index: 1, kind: input, shape index: {}]
  %s2 = inlined_call_operand.vmem [shape: f32[2,1,256], index: 2, kind: output, shape index: {0}]
  %s3 = inlined_call_operand.vmem [shape: f32[2,1,256], index: 3, kind: output, shape index: {1}]
  %4 = xla_tuple %s2, %s3
  %s5 = sld [smem:[#allocation0]]
  $region49: #{dice_cl_ce_loss.2} parent=0
    _
  %s7 = ssub.s32 1, %s5
  %s8 = scalar_select 0, %s7, %s5
  loop: start=0, step=1, limit=4
  $region2: #{dice_cl_ce_loss.2} parent=0 // loop_pre_header
    _
  $region3: #{dice_cl_ce_loss.2} parent=0 // loop_header
    %s10 = sphi 0, %s14
    %p11 = scmp.ge.s32.totalorder %s10, 4
    %s17 = sphi 0, %s29
    %s18 = sphi 0, %s25
    %s19 = sphi 0, %s17
    %s20 = sphi 0, %s18
    %s21 = sphi 0, %s19
    %s22 = sphi 0, %s20
    %s34 = sphi 0, %s36
    %s37 = sphi 0, %s34
    %s38 = sphi 0, %s37
    %s54 = sphi 0, %s38
    %s62 = sphi 0, %s64
    %s65 = sphi 0, %s62
    %s66 = sphi 0, %s65
    %s82 = sphi 0, %s66
    %s90 = sphi 0, %s92
    %s93 = sphi 0, %s90
    %s94 = sphi 0, %s93
    %s110 = sphi 0, %s94
    %s118 = sphi 0, %s120
    %s121 = sphi 0, %s118
    %s122 = sphi 0, %s121
    %s138 = sphi 0, %s122
  $region4: #{dice_cl_ce_loss.2} parent=0 // loop_header_branch
    %13 = sbr.rel (%p11) target = $region8
  $region5: #{dice_cl_ce_loss.2} parent=0 // loop_body
    %s15 = ssub.s32 %s10, 1
    %s16 = ssub.s32 %s10, 2
    %s23 = sadd.s32 1, %s18
    %p24 = scmp.ge.s32.totalorder %s23, 1
    %s25 = scalar_select %p24, 0, %s23
    %s26 = sadd.s32 1, %s17
    %s27 = scalar_select %p24, %s26, %s17
    %p28 = scmp.ge.s32.totalorder %s27, 2
    %s29 = scalar_select %p28, 0, %s27
    %s30 = ssub.s32 %s17, %s29
    %s31 = ssub.s32 %s18, %s25
    %s32 = sor.u32 %s30, %s31
    %p33 = scmp.eq.s32.totalorder %s32, 0
    %s35 = sadd.s32 %s34, 1
    %s36 = scalar_select %p33, %s34, %s35
    %p39 = pneg %p33
    %p40 = scmp.eq.s32.totalorder %s10, 1
    %p41 = por %p39, %p40
    %p42 = scmp.ne.s32.totalorder %s34, %s37
    %p43 = scmp.eq.s32.totalorder %s10, 0
    %p44 = por %p42, %p43
    %p45 = scmp.ne.s32.totalorder %s34, %s37
    %p46 = scmp.eq.s32.totalorder %s15, 1
    %p47 = por %p45, %p46
    %p48 = scmp.ne.s32.totalorder %s37, %s38
    %p49 = scmp.eq.s32.totalorder %s15, 0
    %p50 = por %p48, %p49
    %p51 = scmp.ne.s32.totalorder %s37, %s38
    %p52 = scmp.eq.s32.totalorder %s16, 1
    %p53 = por %p51, %p52
    %p55 = scmp.ne.s32.totalorder %s38, %s54
    %p56 = scmp.eq.s32.totalorder %s16, 0
    %p57 = por %p55, %p56
    %s58 = ssub.s32 %s17, %s29
    %s59 = ssub.s32 %s18, %s25
    %s60 = sor.u32 %s58, %s59
    %p61 = scmp.eq.s32.totalorder %s60, 0
    %s63 = sadd.s32 %s62, 1
    %s64 = scalar_select %p61, %s62, %s63
    %p67 = pneg %p61
    %p68 = scmp.eq.s32.totalorder %s10, 1
    %p69 = por %p67, %p68
    %p70 = scmp.ne.s32.totalorder %s62, %s65
    %p71 = scmp.eq.s32.totalorder %s10, 0
    %p72 = por %p70, %p71
    %p73 = scmp.ne.s32.totalorder %s62, %s65
    %p74 = scmp.eq.s32.totalorder %s15, 1
    %p75 = por %p73, %p74
    %p76 = scmp.ne.s32.totalorder %s65, %s66
    %p77 = scmp.eq.s32.totalorder %s15, 0
    %p78 = por %p76, %p77
    %p79 = scmp.ne.s32.totalorder %s65, %s66
    %p80 = scmp.eq.s32.totalorder %s16, 1
    %p81 = por %p79, %p80
    %p83 = scmp.ne.s32.totalorder %s66, %s82
    %p84 = scmp.eq.s32.totalorder %s16, 0
    %p85 = por %p83, %p84
    %s86 = ssub.s32 %s17, %s29
    %s87 = ssub.s32 %s18, %s25
    %s88 = sor.u32 %s86, %s87
    %p89 = scmp.eq.s32.totalorder %s88, 0
    %s91 = sadd.s32 %s90, 1
    %s92 = scalar_select %p89, %s90, %s91
    %p95 = pneg %p89
    %p96 = scmp.eq.s32.totalorder %s10, 1
    %p97 = por %p95, %p96
    %p98 = scmp.ne.s32.totalorder %s90, %s93
    %p99 = scmp.eq.s32.totalorder %s10, 0
    %p100 = por %p98, %p99
    %p101 = scmp.ne.s32.totalorder %s90, %s93
    %p102 = scmp.eq.s32.totalorder %s15, 1
    %p103 = por %p101, %p102
    %p104 = scmp.ne.s32.totalorder %s93, %s94
    %p105 = scmp.eq.s32.totalorder %s15, 0
    %p106 = por %p104, %p105
    %p107 = scmp.ne.s32.totalorder %s93, %s94
    %p108 = scmp.eq.s32.totalorder %s16, 1
    %p109 = por %p107, %p108
    %p111 = scmp.ne.s32.totalorder %s94, %s110
    %p112 = scmp.eq.s32.totalorder %s16, 0
    %p113 = por %p111, %p112
    %s114 = ssub.s32 %s17, %s29
    %s115 = ssub.s32 %s18, %s25
    %s116 = sor.u32 %s114, %s115
    %p117 = scmp.eq.s32.totalorder %s116, 0
    %s119 = sadd.s32 %s118, 1
    %s120 = scalar_select %p117, %s118, %s119
    %p123 = pneg %p117
    %p124 = scmp.eq.s32.totalorder %s10, 1
    %p125 = por %p123, %p124
    %p126 = scmp.ne.s32.totalorder %s118, %s121
    %p127 = scmp.eq.s32.totalorder %s10, 0
    %p128 = por %p126, %p127
    %p129 = scmp.ne.s32.totalorder %s118, %s121
    %p130 = scmp.eq.s32.totalorder %s15, 1
    %p131 = por %p129, %p130
    %p132 = scmp.ne.s32.totalorder %s121, %s122
    %p133 = scmp.eq.s32.totalorder %s15, 0
    %p134 = por %p132, %p133
    %p135 = scmp.ne.s32.totalorder %s121, %s122
    %p136 = scmp.eq.s32.totalorder %s16, 1
    %p137 = por %p135, %p136
    %p139 = scmp.ne.s32.totalorder %s122, %s138
    %p140 = scmp.eq.s32.totalorder %s16, 0
    %p141 = por %p139, %p140
    %p142 = scmp.le.s32.totalorder 1, %s10
    %p143 = scmp.lt.s32.totalorder %s10, 3
    %p144 = pnand %p142, %p143
    %p145 = pneg %p144
    // Predicated region
    $region9: #{dice_cl_ce_loss.2} parent=5 // pred_check
      _
    $region10: #{dice_cl_ce_loss.2} parent=5 // pred_check_branch
      %147 = sbr.rel (%p144) target = $region12
    $region11: #{dice_cl_ce_loss.2} parent=5 // pred_region
      %s148 = ssub.s32 %s10, 1
    $region12: #{dice_cl_ce_loss.2} parent=5 // pred_fallthru
      _
    %p149 = scmp.lt.s32.totalorder %s10, 2
    // Predicated region
    $region13: #{dice_cl_ce_loss.2} parent=5 // pred_check
      %p150 = pneg %p149
    $region14: #{dice_cl_ce_loss.2} parent=5 // pred_check_branch
      %152 = sbr.rel (%p150) target = $region16
    $region15: #{dice_cl_ce_loss.2} parent=5 // pred_region
      // Predicated region
      $region17: #{dice_cl_ce_loss.2} parent=15 // pred_check
        %p153 = pneg %p44
      $region18: #{dice_cl_ce_loss.2} parent=15 // pred_check_branch
        %155 = sbr.rel (%p153) target = $region20
      $region19: #{dice_cl_ce_loss.2} parent=15 // pred_region
        %s156 = smul.u32 2, %s18
        %p157 = scmp.lt.s32.totalorder %s17, 1
        %s158 = scalar_select %p157, %s17, 1
        %p159 = scmp.lt.s32.totalorder %s156, 1
        %s160 = scalar_select %p159, %s156, 1
        %s161 = smul.addr %s158, 2
        %s162 = sadd.s32 %s160, %s161
        %s163 = smul.addr %s162, 4
        %s164 = scalar_lea.vmem %s0, %s163
        %s165 = smul.u32 2, %s18
      $region20: #{dice_cl_ce_loss.2} parent=15 // pred_fallthru
        _
      // Predicated region
      $region21: #{dice_cl_ce_loss.2} parent=15 // pred_check
        %p166 = pneg %p72
      $region22: #{dice_cl_ce_loss.2} parent=15 // pred_check_branch
        %168 = sbr.rel (%p166) target = $region24
      $region23: #{dice_cl_ce_loss.2} parent=15 // pred_region
        %s169 = smul.u32 2, %s18
        %p170 = scmp.lt.s32.totalorder %s17, 1
        %s171 = scalar_select %p170, %s17, 1
        %p172 = scmp.lt.s32.totalorder %s169, 1
        %s173 = scalar_select %p172, %s169, 1
        %s174 = smul.addr %s171, 2
        %s175 = sadd.s32 %s173, %s174
        %s176 = scalar_lea.vmem %s1, %s175
        %s177 = smul.u32 2, %s18
      $region24: #{dice_cl_ce_loss.2} parent=15 // pred_fallthru
        _
    $region16: #{dice_cl_ce_loss.2} parent=5 // pred_fallthru
      _
    %p178 = scmp.le.s32.totalorder 1, %s10
    %p179 = scmp.lt.s32.totalorder %s10, 3
    %p180 = pnand %p178, %p179
    %p181 = pneg %p180
    // Predicated region
    $region25: #{dice_cl_ce_loss.2} parent=5 // pred_check
      _
    $region26: #{dice_cl_ce_loss.2} parent=5 // pred_check_branch
      %183 = sbr.rel (%p180) target = $region28
    $region27: #{dice_cl_ce_loss.2} parent=5 // pred_region
      %s184 = ssub.s32 %s10, 1
      %s185 = smul.u32 2, %s20
      %p186 = scmp.lt.s32.totalorder %s19, 1
      %s187 = scalar_select %p186, %s19, 1
      %p188 = scmp.lt.s32.totalorder %s185, 1
      %s189 = scalar_select %p188, %s185, 1
      %s190 = smul.addr %s187, 2
      %s191 = sadd.s32 %s189, %s190
      %s192 = smul.addr %s191, 4
      %s193 = scalar_lea.vmem %s0, %s192
      %p194 = pneg %p50
      %p195 = pneg %p47
      %s196 = smul.u32 2, %s20
      %p197 = scmp.lt.s32.totalorder %s19, 1
      %s198 = scalar_select %p197, %s19, 1
      %p199 = scmp.lt.s32.totalorder %s196, 1
      %s200 = scalar_select %p199, %s196, 1
      %s201 = smul.addr %s198, 2
      %s202 = sadd.s32 %s200, %s201
      %s203 = scalar_lea.vmem %s1, %s202
      %p204 = pneg %p78
      %p205 = pneg %p75
      %p206 = pneg %p106
      %p207 = pneg %p103
      %s208 = smul.u32 2, %s20
      %p209 = scmp.lt.s32.totalorder %s19, 1
      %s210 = scalar_select %p209, %s19, 1
      %p211 = scmp.lt.s32.totalorder %s208, 1
      %s212 = scalar_select %p211, %s208, 1
      %s213 = smul.addr %s210, 2
      %s214 = sadd.s32 %s212, %s213
      %s215 = scalar_lea.vmem %s2, %s214
      %p216 = pneg %p134
      %p217 = pneg %p131
      %s218 = smul.u32 2, %s20
      %p219 = scmp.lt.s32.totalorder %s19, 1
      %s220 = scalar_select %p219, %s19, 1
      %p221 = scmp.lt.s32.totalorder %s218, 1
      %s222 = scalar_select %p221, %s218, 1
      %s223 = smul.addr %s220, 2
      %s224 = sadd.s32 %s222, %s223
      %s225 = scalar_lea.vmem %s3, %s224
      %s226 = smul.u32 2, %s20
      %p227 = scmp.lt.s32.totalorder %s19, 1
      %s228 = scalar_select %p227, %s19, 1
      %p229 = scmp.lt.s32.totalorder %s226, 1
      %s230 = scalar_select %p229, %s226, 1
      %s231 = smul.addr %s228, 2
      %s232 = sadd.s32 %s230, %s231
      %s233 = smul.addr %s232, 4
      %s234 = scalar_lea.vmem %s0, %s233
      %s235 = smul.u32 2, %s20
      %s236 = smul.u32 2, %s20
      %p237 = scmp.lt.s32.totalorder %s19, 1
      %s238 = scalar_select %p237, %s19, 1
      %p239 = scmp.lt.s32.totalorder %s236, 1
      %s240 = scalar_select %p239, %s236, 1
      %s241 = smul.addr %s238, 2
      %s242 = sadd.s32 %s240, %s241
      %s243 = scalar_lea.vmem %s1, %s242
      %s244 = smul.u32 2, %s20
      %s245 = smul.u32 2, %s20
      %p246 = scmp.lt.s32.totalorder %s19, 1
      %s247 = scalar_select %p246, %s19, 1
      %p248 = scmp.lt.s32.totalorder %s245, 1
      %s249 = scalar_select %p248, %s245, 1
      %s250 = smul.addr %s247, 2
      %s251 = sadd.s32 %s249, %s250
      %s252 = scalar_lea.vmem %s2, %s251
      %s253 = smul.u32 2, %s20
      %s254 = smul.u32 2, %s20
      %p255 = scmp.lt.s32.totalorder %s19, 1
      %s256 = scalar_select %p255, %s19, 1
      %p257 = scmp.lt.s32.totalorder %s254, 1
      %s258 = scalar_select %p257, %s254, 1
      %s259 = smul.addr %s256, 2
      %s260 = sadd.s32 %s258, %s259
      %s261 = scalar_lea.vmem %s3, %s260
      %s262 = smul.u32 2, %s20
      %v263 = vld [vmem:[%s234] sm:$0xff]
      %v264 = vld [vmem:[%s243] sm:$0x3]
      %v266 = vcombine.high %v263, %v263
      %vm268 = vcmask 1043456
      %v269 = vsel %vm268, %v263, -inf
      %v270 = vrot.slane %v269, 4
      %v271 = vmax.f32 %v269, %v270
      %v272 = vrot.slane %v271, 2
      %v273 = vmax.f32 %v271, %v272
      %v274 = vrot.slane %v273, 1
      %v275 = vmax.f32 %v273, %v274
      %v276 = vsel %vm268, %v266, -inf
      %v277 = vrot.slane %v276, 4
      %v278 = vmax.f32 %v276, %v277
      %v279 = vrot.slane %v278, 2
      %v280 = vmax.f32 %v278, %v279
      %v281 = vrot.slane %v280, 1
      %v282 = vmax.f32 %v280, %v281
      %v285 = vcombine.low %v275, %v282
      %v287 = vsub.f32 %v263, %v285
      %v288 = vmul.f32 %v287, 1.442695
      %v289 = vpow.pop %v288
      %v291 = vcombine.high %v289, %v289
      %v293 = vsel %vm268, %v289, 0.0
      %v294 = vrot.slane %v293, 4
      %v295 = vadd.f32 %v293, %v294
      %v296 = vrot.slane %v295, 2
      %v297 = vadd.f32 %v295, %v296
      %v298 = vrot.slane %v297, 1
      %v299 = vadd.f32 %v297, %v298
      %v300 = vsel %vm268, %v291, 0.0
      %v301 = vrot.slane %v300, 4
      %v302 = vadd.f32 %v300, %v301
      %v303 = vrot.slane %v302, 2
      %v304 = vadd.f32 %v302, %v303
      %v305 = vrot.slane %v304, 1
      %v306 = vadd.f32 %v304, %v305
      %v307 = vrcp.pop %v299
      %v308 = vrcp.pop %v306
      %v309 = vmul.f32 %v299, %v307
      %v310 = vmul.f32 %v306, %v308
      %v311 = vsub.f32 2.0, %v309
      %v312 = vsub.f32 2.0, %v310
      %v313 = vmul.f32 %v307, %v311
      %v314 = vmul.f32 %v308, %v312
      %v315 = vlaneseq
      %v316 = vshrl.u32 %v315, 7
      %v317 = vlaneseq
      %v318 = vshrl.u32 %v317, 7
      %v319 = vsub.s32 0, %v318
      %v320 = vrot.slane %v264, %v319
      %v321 = vlaneseq
      %v322 = vshrl.u32 %v321, 7
      %v323 = vsub.s32 1, %v322
      %v324 = vrot.slane %v264, %v323
      %vm325 = vcmp.eq.s32.totalorder %v316, %v320
      %vm326 = vcmp.eq.s32.totalorder %v316, %v324
      %v327 = vsel %vm325, 1, 0
      %v328 = vsel %vm326, 1, 0
      %v329 = vcvt.s32.f32 %v327
      %v330 = vcvt.s32.f32 %v328
      %v333 = vcombine.low %v329, %v330
      %v335 = vmul.f32 %v263, %v333
      %v337 = vcombine.high %v335, %v335
      %v339 = vsel %vm268, %v335, 0.0
      %v340 = vrot.slane %v339, 4
      %v341 = vadd.f32 %v339, %v340
      %v342 = vrot.slane %v341, 2
      %v343 = vadd.f32 %v341, %v342
      %v344 = vrot.slane %v343, 1
      %v345 = vadd.f32 %v343, %v344
      %v346 = vsel %vm268, %v337, 0.0
      %v347 = vrot.slane %v346, 4
      %v348 = vadd.f32 %v346, %v347
      %v349 = vrot.slane %v348, 2
      %v350 = vadd.f32 %v348, %v349
      %v351 = vrot.slane %v350, 1
      %v352 = vadd.f32 %v350, %v351
      %v353 = vlog2.pop %v299
      %v354 = vmul.f32 %v353, 0.6931472
      %v355 = vlog2.pop %v306
      %v356 = vmul.f32 %v355, 0.6931472
      %v357 = vadd.f32 %v354, %v275
      %v358 = vadd.f32 %v356, %v282
      %v359 = vsub.f32 %v357, %v345
      %v360 = vsub.f32 %v358, %v352
      %v363 = vcombine.low %v359, %v360
      %v365 = vunpack.c.l.s4 1966171168
      %v366 = vunpack.c.0.s8 %v365
      %v367 = vlaneseq
      %v368 = vshrl.u32 %v367, 7
      %v369 = vsub.s32 %v366, %v368
      %v370 = vrot.slane %v363, %v369
      %v372 = vunpack.c.l.s4 1966171168
      %v373 = vunpack.c.0.s8 %v372
      %v374 = vlaneseq
      %v375 = vshrl.u32 %v374, 7
      %v376 = vsub.s32 %v373, %v375
      %v377 = vrot.slane %v370, %v376
      %v379 = vlaneseq
      %vm380 = vcmp.ge.s32.totalorder %v379, 0
      %vm381 = vcmp.lt.s32.totalorder %v379, 256
      %vm382 = vmand %vm380, %vm381
      %383 = vst.msk [vmem:[%s252] sm:$0x3] %vm382, %v377
      %v386 = vcombine.low %v313, %v314
      %v387 = vrot.slane %v386, 7
      %v389 = vmul.f32 %v289, %v387
      %v392 = vunpack.c.l.s4 1966171168
      %v393 = vunpack.c.0.s8 %v392
      %v394 = vlaneseq
      %v395 = vshrl.u32 %v394, 7
      %v396 = vsub.s32 %v393, %v395
      %v397 = vrot.slane %v389, %v396
      %v398 = vcombine.high %v397, %v397
      %v400 = vunpack.c.l.s4 1966171168
      %v401 = vunpack.c.0.s8 %v400
      %v402 = vlaneseq
      %v403 = vshrl.u32 %v402, 7
      %v404 = vsub.s32 %v401, %v403
      %v405 = vrot.slane %v398, %v404
      %407 = vst.msk [vmem:[%s261] sm:$0x3] %vm382, %v405
      %s408 = smul.u32 2, %s20
      %p409 = scmp.lt.s32.totalorder %s19, 1
      %s410 = scalar_select %p409, %s19, 1
      %p411 = scmp.lt.s32.totalorder %s408, 1
      %s412 = scalar_select %p411, %s408, 1
      %s413 = smul.addr %s410, 2
      %s414 = sadd.s32 %s412, %s413
      %s415 = scalar_lea.vmem %s2, %s414
      %s416 = smul.u32 2, %s20
      %p417 = scmp.lt.s32.totalorder %s19, 1
      %s418 = scalar_select %p417, %s19, 1
      %p419 = scmp.lt.s32.totalorder %s416, 1
      %s420 = scalar_select %p419, %s416, 1
      %s421 = smul.addr %s418, 2
      %s422 = sadd.s32 %s420, %s421
      %s423 = scalar_lea.vmem %s3, %s422
      // Predicated region
      $region29: #{dice_cl_ce_loss.2} parent=27 // pred_check
        %p424 = pneg %p103
      $region30: #{dice_cl_ce_loss.2} parent=27 // pred_check_branch
        %426 = sbr.rel (%p424) target = $region32
      $region31: #{dice_cl_ce_loss.2} parent=27 // pred_region
        %s427 = smul.u32 2, %s20
      $region32: #{dice_cl_ce_loss.2} parent=27 // pred_fallthru
        _
      // Predicated region
      $region33: #{dice_cl_ce_loss.2} parent=27 // pred_check
        %p428 = pneg %p131
      $region34: #{dice_cl_ce_loss.2} parent=27 // pred_check_branch
        %430 = sbr.rel (%p428) target = $region36
      $region35: #{dice_cl_ce_loss.2} parent=27 // pred_region
        %s431 = smul.u32 2, %s20
      $region36: #{dice_cl_ce_loss.2} parent=27 // pred_fallthru
        _
    $region28: #{dice_cl_ce_loss.2} parent=5 // pred_fallthru
      _
    %p432 = scmp.le.s32.totalorder 2, %s10
    // Predicated region
    $region37: #{dice_cl_ce_loss.2} parent=5 // pred_check
      %p433 = pneg %p432
    $region38: #{dice_cl_ce_loss.2} parent=5 // pred_check_branch
      %435 = sbr.rel (%p433) target = $region40
    $region39: #{dice_cl_ce_loss.2} parent=5 // pred_region
      %s436 = ssub.s32 %s10, 2
      // Predicated region
      $region41: #{dice_cl_ce_loss.2} parent=39 // pred_check
        %p437 = pneg %p109
      $region42: #{dice_cl_ce_loss.2} parent=39 // pred_check_branch
        %439 = sbr.rel (%p437) target = $region44
      $region43: #{dice_cl_ce_loss.2} parent=39 // pred_region
        %s440 = smul.u32 2, %s22
        %p441 = scmp.lt.s32.totalorder %s21, 1
        %s442 = scalar_select %p441, %s21, 1
        %p443 = scmp.lt.s32.totalorder %s440, 1
        %s444 = scalar_select %p443, %s440, 1
        %s445 = smul.addr %s442, 2
        %s446 = sadd.s32 %s444, %s445
        %s447 = scalar_lea.vmem %s2, %s446
      $region44: #{dice_cl_ce_loss.2} parent=39 // pred_fallthru
        _
      // Predicated region
      $region45: #{dice_cl_ce_loss.2} parent=39 // pred_check
        %p448 = pneg %p137
      $region46: #{dice_cl_ce_loss.2} parent=39 // pred_check_branch
        %450 = sbr.rel (%p448) target = $region48
      $region47: #{dice_cl_ce_loss.2} parent=39 // pred_region
        %s451 = smul.u32 2, %s22
        %p452 = scmp.lt.s32.totalorder %s21, 1
        %s453 = scalar_select %p452, %s21, 1
        %p454 = scmp.lt.s32.totalorder %s451, 1
        %s455 = scalar_select %p454, %s451, 1
        %s456 = smul.addr %s453, 2
        %s457 = sadd.s32 %s455, %s456
        %s458 = scalar_lea.vmem %s3, %s457
      $region48: #{dice_cl_ce_loss.2} parent=39 // pred_fallthru
        _
    $region40: #{dice_cl_ce_loss.2} parent=5 // pred_fallthru
      _
  $region6: #{dice_cl_ce_loss.2} parent=0 // loop_footer
    %s14 = sadd.s32 1, %s10
  $region7: #{dice_cl_ce_loss.2} parent=0 // loop_footer_branch
    %9 = sbr.rel target = $region3
  $region8: #{dice_cl_ce_loss.2} parent=0 // loop_exit
    _

// kernel: dice_cl_ce_loss.3
$region0: #{dice_cl_ce_loss.3}
  #allocation0 [shape = 'u32[]', space=smem, size = 0x4, offset = 0x4, fixed_abs, tag = 'smem constant byte address 0x4 - core index']
  #allocation1 [shape = 'u32[144,128]{1,0:T(1,128)}', space=vmem, size = 0x12000, scoped, tag = 'internal scratch']
  %s0 = inlined_call_operand.vmem [shape: f32[2,16,16], index: 0, kind: input, shape index: {}]
  %s1 = inlined_call_operand.vmem [shape: s32[2,16,16], index: 1, kind: input, shape index: {}]
  %s2 = inlined_call_operand.vmem [shape: f32[2,16,16], index: 2, kind: input, shape index: {}]
  %s3 = inlined_call_operand.vmem [shape: f32[2,1,1], index: 3, kind: output, shape index: {0}]
  %s4 = inlined_call_operand.vmem [shape: f32[2,1,1], index: 4, kind: output, shape index: {1}]
  %5 = xla_tuple %s3, %s4
  %s6 = sld [smem:[#allocation0]]
  $region67: #{dice_cl_ce_loss.3} parent=0
    _
  %s8 = ssub.s32 1, %s6
  %s9 = scalar_select 0, %s8, %s6
  loop: start=0, step=1, limit=4
  $region2: #{dice_cl_ce_loss.3} parent=0 // loop_pre_header
    _
  $region3: #{dice_cl_ce_loss.3} parent=0 // loop_header
    %s11 = sphi 0, %s15
    %p12 = scmp.ge.s32.totalorder %s11, 4
    %s21 = sphi 0, %s23
    %s24 = sphi 0, %s21
    %s25 = sphi 0, %s24
    %s41 = sphi 0, %s25
    %s47 = sphi 0, %s49
    %s50 = sphi 0, %s47
    %s51 = sphi 0, %s50
    %s67 = sphi 0, %s51
    %s73 = sphi 0, %s75
    %s76 = sphi 0, %s73
    %s77 = sphi 0, %s76
    %s93 = sphi 0, %s77
    %s99 = sphi 0, %s101
    %s102 = sphi 0, %s99
    %s103 = sphi 0, %s102
    %s119 = sphi 0, %s103
    %s125 = sphi 0, %s127
    %s128 = sphi 0, %s125
    %s129 = sphi 0, %s128
    %s145 = sphi 0, %s129
  $region4: #{dice_cl_ce_loss.3} parent=0 // loop_header_branch
    %14 = sbr.rel (%p12) target = $region8
  $region5: #{dice_cl_ce_loss.3} parent=0 // loop_body
    %s16 = ssub.s32 %s11, 1
    %s17 = ssub.s32 %s11, 2
    %s18 = sadd.s32 %s11, 1
    %s19 = ssub.s32 %s11, %s18
    %p20 = scmp.eq.s32.totalorder %s19, 0
    %s22 = sadd.s32 %s21, 1
    %s23 = scalar_select %p20, %s21, %s22
    %p26 = pneg %p20
    %p27 = scmp.eq.s32.totalorder %s11, 1
    %p28 = por %p26, %p27
    %p29 = scmp.ne.s32.totalorder %s21, %s24
    %p30 = scmp.eq.s32.totalorder %s11, 0
    %p31 = por %p29, %p30
    %p32 = scmp.ne.s32.totalorder %s21, %s24
    %p33 = scmp.eq.s32.totalorder %s16, 1
    %p34 = por %p32, %p33
    %p35 = scmp.ne.s32.totalorder %s24, %s25
    %p36 = scmp.eq.s32.totalorder %s16, 0
    %p37 = por %p35, %p36
    %p38 = scmp.ne.s32.totalorder %s24, %s25
    %p39 = scmp.eq.s32.totalorder %s17, 1
    %p40 = por %p38, %p39
    %p42 = scmp.ne.s32.totalorder %s25, %s41
    %p43 = scmp.eq.s32.totalorder %s17, 0
    %p44 = por %p42, %p43
    %s45 = ssub.s32 %s11, %s18
    %p46 = scmp.eq.s32.totalorder %s45, 0
    %s48 = sadd.s32 %s47, 1
    %s49 = scalar_select %p46, %s47, %s48
    %p52 = pneg %p46
    %p53 = scmp.eq.s32.totalorder %s11, 1
    %p54 = por %p52, %p53
    %p55 = scmp.ne.s32.totalorder %s47, %s50
    %p56 = scmp.eq.s32.totalorder %s11, 0
    %p57 = por %p55, %p56
    %p58 = scmp.ne.s32.totalorder %s47, %s50
    %p59 = scmp.eq.s32.totalorder %s16, 1
    %p60 = por %p58, %p59
    %p61 = scmp.ne.s32.totalorder %s50, %s51
    %p62 = scmp.eq.s32.totalorder %s16, 0
    %p63 = por %p61, %p62
    %p64 = scmp.ne.s32.totalorder %s50, %s51
    %p65 = scmp.eq.s32.totalorder %s17, 1
    %p66 = por %p64, %p65
    %p68 = scmp.ne.s32.totalorder %s51, %s67
    %p69 = scmp.eq.s32.totalorder %s17, 0
    %p70 = por %p68, %p69
    %s71 = ssub.s32 %s11, %s18
    %p72 = scmp.eq.s32.totalorder %s71, 0
    %s74 = sadd.s32 %s73, 1
    %s75 = scalar_select %p72, %s73, %s74
    %p78 = pneg %p72
    %p79 = scmp.eq.s32.totalorder %s11, 1
    %p80 = por %p78, %p79
    %p81 = scmp.ne.s32.totalorder %s73, %s76
    %p82 = scmp.eq.s32.totalorder %s11, 0
    %p83 = por %p81, %p82
    %p84 = scmp.ne.s32.totalorder %s73, %s76
    %p85 = scmp.eq.s32.totalorder %s16, 1
    %p86 = por %p84, %p85
    %p87 = scmp.ne.s32.totalorder %s76, %s77
    %p88 = scmp.eq.s32.totalorder %s16, 0
    %p89 = por %p87, %p88
    %p90 = scmp.ne.s32.totalorder %s76, %s77
    %p91 = scmp.eq.s32.totalorder %s17, 1
    %p92 = por %p90, %p91
    %p94 = scmp.ne.s32.totalorder %s77, %s93
    %p95 = scmp.eq.s32.totalorder %s17, 0
    %p96 = por %p94, %p95
    %s97 = ssub.s32 %s11, %s18
    %p98 = scmp.eq.s32.totalorder %s97, 0
    %s100 = sadd.s32 %s99, 1
    %s101 = scalar_select %p98, %s99, %s100
    %p104 = pneg %p98
    %p105 = scmp.eq.s32.totalorder %s11, 1
    %p106 = por %p104, %p105
    %p107 = scmp.ne.s32.totalorder %s99, %s102
    %p108 = scmp.eq.s32.totalorder %s11, 0
    %p109 = por %p107, %p108
    %p110 = scmp.ne.s32.totalorder %s99, %s102
    %p111 = scmp.eq.s32.totalorder %s16, 1
    %p112 = por %p110, %p111
    %p113 = scmp.ne.s32.totalorder %s102, %s103
    %p114 = scmp.eq.s32.totalorder %s16, 0
    %p115 = por %p113, %p114
    %p116 = scmp.ne.s32.totalorder %s102, %s103
    %p117 = scmp.eq.s32.totalorder %s17, 1
    %p118 = por %p116, %p117
    %p120 = scmp.ne.s32.totalorder %s103, %s119
    %p121 = scmp.eq.s32.totalorder %s17, 0
    %p122 = por %p120, %p121
    %s123 = ssub.s32 %s11, %s18
    %p124 = scmp.eq.s32.totalorder %s123, 0
    %s126 = sadd.s32 %s125, 1
    %s127 = scalar_select %p124, %s125, %s126
    %p130 = pneg %p124
    %p131 = scmp.eq.s32.totalorder %s11, 1
    %p132 = por %p130, %p131
    %p133 = scmp.ne.s32.totalorder %s125, %s128
    %p134 = scmp.eq.s32.totalorder %s11, 0
    %p135 = por %p133, %p134
    %p136 = scmp.ne.s32.totalorder %s125, %s128
    %p137 = scmp.eq.s32.totalorder %s16, 1
    %p138 = por %p136, %p137
    %p139 = scmp.ne.s32.totalorder %s128, %s129
    %p140 = scmp.eq.s32.totalorder %s16, 0
    %p141 = por %p139, %p140
    %p142 = scmp.ne.s32.totalorder %s128, %s129
    %p143 = scmp.eq.s32.totalorder %s17, 1
    %p144 = por %p142, %p143
    %p146 = scmp.ne.s32.totalorder %s129, %s145
    %p147 = scmp.eq.s32.totalorder %s17, 0
    %p148 = por %p146, %p147
    %p149 = scmp.le.s32.totalorder 1, %s11
    %p150 = scmp.lt.s32.totalorder %s11, 3
    %p151 = pnand %p149, %p150
    %p152 = pneg %p151
    // Predicated region
    $region9: #{dice_cl_ce_loss.3} parent=5 // pred_check
      _
    $region10: #{dice_cl_ce_loss.3} parent=5 // pred_check_branch
      %154 = sbr.rel (%p151) target = $region12
    $region11: #{dice_cl_ce_loss.3} parent=5 // pred_region
      %s155 = ssub.s32 %s11, 1
    $region12: #{dice_cl_ce_loss.3} parent=5 // pred_fallthru
      _
    %p156 = scmp.lt.s32.totalorder %s11, 2
    // Predicated region
    $region13: #{dice_cl_ce_loss.3} parent=5 // pred_check
      %p157 = pneg %p156
    $region14: #{dice_cl_ce_loss.3} parent=5 // pred_check_branch
      %159 = sbr.rel (%p157) target = $region16
    $region15: #{dice_cl_ce_loss.3} parent=5 // pred_region
      // Predicated region
      $region17: #{dice_cl_ce_loss.3} parent=15 // pred_check
        %p160 = pneg %p31
      $region18: #{dice_cl_ce_loss.3} parent=15 // pred_check_branch
        %162 = sbr.rel (%p160) target = $region20
      $region19: #{dice_cl_ce_loss.3} parent=15 // pred_region
        %p163 = scmp.lt.s32.totalorder %s11, 1
        %s164 = scalar_select %p163, %s11, 1
        %s165 = smul.addr %s164, 2
        %s166 = smul.addr %s165, 8
        %s167 = scalar_lea.vmem %s0, %s166
      $region20: #{dice_cl_ce_loss.3} parent=15 // pred_fallthru
        _
      // Predicated region
      $region21: #{dice_cl_ce_loss.3} parent=15 // pred_check
        %p168 = pneg %p57
      $region22: #{dice_cl_ce_loss.3} parent=15 // pred_check_branch
        %170 = sbr.rel (%p168) target = $region24
      $region23: #{dice_cl_ce_loss.3} parent=15 // pred_region
        %p171 = scmp.lt.s32.totalorder %s11, 1
        %s172 = scalar_select %p171, %s11, 1
        %s173 = smul.addr %s172, 2
        %s174 = smul.addr %s173, 8
        %s175 = scalar_lea.vmem %s1, %s174
      $region24: #{dice_cl_ce_loss.3} parent=15 // pred_fallthru
        _
      // Predicated region
      $region25: #{dice_cl_ce_loss.3} parent=15 // pred_check
        %p176 = pneg %p83
      $region26: #{dice_cl_ce_loss.3} parent=15 // pred_check_branch
        %178 = sbr.rel (%p176) target = $region28
      $region27: #{dice_cl_ce_loss.3} parent=15 // pred_region
        %p179 = scmp.lt.s32.totalorder %s11, 1
        %s180 = scalar_select %p179, %s11, 1
        %s181 = smul.addr %s180, 2
        %s182 = smul.addr %s181, 8
        %s183 = scalar_lea.vmem %s2, %s182
      $region28: #{dice_cl_ce_loss.3} parent=15 // pred_fallthru
        _
    $region16: #{dice_cl_ce_loss.3} parent=5 // pred_fallthru
      _
    %p184 = scmp.le.s32.totalorder 1, %s11
    %p185 = scmp.lt.s32.totalorder %s11, 3
    %p186 = pnand %p184, %p185
    %p187 = pneg %p186
    // Predicated region
    $region29: #{dice_cl_ce_loss.3} parent=5 // pred_check
      _
    $region30: #{dice_cl_ce_loss.3} parent=5 // pred_check_branch
      %189 = sbr.rel (%p186) target = $region32
    $region31: #{dice_cl_ce_loss.3} parent=5 // pred_region
      %s190 = ssub.s32 %s11, 1
      %p191 = scmp.lt.s32.totalorder %s16, 1
      %s192 = scalar_select %p191, %s16, 1
      %s193 = smul.addr %s192, 2
      %s194 = smul.addr %s193, 8
      %s195 = scalar_lea.vmem %s0, %s194
      %p196 = pneg %p37
      %p197 = pneg %p34
      %p198 = scmp.lt.s32.totalorder %s16, 1
      %s199 = scalar_select %p198, %s16, 1
      %s200 = smul.addr %s199, 2
      %s201 = smul.addr %s200, 8
      %s202 = scalar_lea.vmem %s1, %s201
      %p203 = pneg %p63
      %p204 = pneg %p60
      %p205 = scmp.lt.s32.totalorder %s16, 1
      %s206 = scalar_select %p205, %s16, 1
      %s207 = smul.addr %s206, 2
      %s208 = smul.addr %s207, 8
      %s209 = scalar_lea.vmem %s2, %s208
      %p210 = pneg %p89
      %p211 = pneg %p86
      %p212 = pneg %p115
      %p213 = pneg %p112
      %p214 = scmp.lt.s32.totalorder %s16, 1
      %s215 = scalar_select %p214, %s16, 1
      %s216 = scalar_lea.vmem %s3, %s215
      %p217 = pneg %p141
      %p218 = pneg %p138
      %p219 = scmp.lt.s32.totalorder %s16, 1
      %s220 = scalar_select %p219, %s16, 1
      %s221 = scalar_lea.vmem %s4, %s220
      %p222 = scmp.lt.s32.totalorder %s16, 1
      %s223 = scalar_select %p222, %s16, 1
      %s224 = smul.addr %s223, 2
      %s225 = smul.addr %s224, 8
      %s226 = scalar_lea.vmem %s0, %s225
      %p227 = scmp.lt.s32.totalorder %s16, 1
      %s228 = scalar_select %p227, %s16, 1
      %s229 = smul.addr %s228, 2
      %s230 = smul.addr %s229, 8
      %s231 = scalar_lea.vmem %s1, %s230
      %p232 = scmp.lt.s32.totalorder %s16, 1
      %s233 = scalar_select %p232, %s16, 1
      %s234 = smul.addr %s233, 2
      %s235 = smul.addr %s234, 8
      %s236 = scalar_lea.vmem %s2, %s235
      %p237 = scmp.lt.s32.totalorder %s16, 1
      %s238 = scalar_select %p237, %s16, 1
      %s239 = scalar_lea.vmem %s3, %s238
      %p240 = scmp.lt.s32.totalorder %s16, 1
      %s241 = scalar_select %p240, %s16, 1
      %s242 = scalar_lea.vmem %s4, %s241
      %v243 = vld [vmem:[%s236] sm:$0xff]
      %v244 = vld [vmem:[%s236 + $0x8] sm:$0xff]
      %v245 = vld [vmem:[%s226] sm:$0xff]
      %v246 = vld [vmem:[%s226 + $0x8] sm:$0xff]
      %vm249 = vcmask 1040384
      %v250 = vrot.slane %v245, 7
      %v251 = vrot.slane %v246, 7
      %v252 = vsel %vm249, %v250, %v251
      %v255 = vsel %vm249, %v245, %v250
      %vm256 = vcmask 1046528
      %v257 = vrot.slane %v245, 1
      %v258 = vrot.slane %v246, 1
      %v259 = vsel %vm256, %v257, %v258
      %v262 = vsel %vm256, %v258, %v246
      %263 = vrot.lane.b32.xlu0 %v245, 1
      %v264 = vpop.permute.xlu0 %263
      %265 = vrot.lane.b32.xlu0 %v246, 1
      %v266 = vpop.permute.xlu0 %265
      %vm269 = vcmask 7168
      %v270 = vsel %vm269, %v245, %v264
      %v271 = vsel %vm269, %v246, %v266
      %272 = vrot.lane.b32.xlu0 %v245, 127
      %v273 = vpop.permute.xlu0 %272
      %274 = vrot.lane.b32.xlu0 %v246, 127
      %v275 = vpop.permute.xlu0 %274
      %vm278 = vcmask 121856
      %v279 = vsel %vm278, %v273, %v245
      %v280 = vsel %vm278, %v275, %v246
      %v281 = vmin.f32 %v255, %v259
      %v282 = vmin.f32 %v252, %v262
      %v283 = vmin.f32 %v245, %v281
      %v284 = vmin.f32 %v246, %v282
      %v285 = vmin.f32 %v270, %v279
      %v286 = vmin.f32 %v271, %v280
      %v287 = vmin.f32 %v245, %v285
      %v288 = vmin.f32 %v246, %v286
      %v289 = vmin.f32 %v283, %v287
      %v290 = vmin.f32 %v284, %v288
      %v293 = vrot.slane %v289, 7
      %v294 = vrot.slane %v290, 7
      %v295 = vsel %vm249, %v293, %v294
      %v298 = vsel %vm249, %v289, %v293
      %v299 = vrot.slane %v289, 1
      %v300 = vrot.slane %v290, 1
      %v301 = vsel %vm256, %v299, %v300
      %v304 = vsel %vm256, %v300, %v290
      %v305 = vmax.f32 %v298, %v301
      %v306 = vmax.f32 %v295, %v304
      %v307 = vmax.f32 %v289, %v305
      %v308 = vmax.f32 %v290, %v306
      %311 = vrot.lane.b32.xlu0 %v307, 1
      %v312 = vpop.permute.xlu0 %311
      %313 = vrot.lane.b32.xlu0 %v308, 1
      %v314 = vpop.permute.xlu0 %313
      %v317 = vsel %vm269, %v307, %v312
      %v318 = vsel %vm269, %v308, %v314
      %319 = vrot.lane.b32.xlu0 %v307, 127
      %v320 = vpop.permute.xlu0 %319
      %321 = vrot.lane.b32.xlu0 %v308, 127
      %v322 = vpop.permute.xlu0 %321
      %v325 = vsel %vm278, %v320, %v307
      %v326 = vsel %vm278, %v322, %v308
      %v327 = vmax.f32 %v317, %v325
      %v328 = vmax.f32 %v318, %v326
      %v329 = vmax.f32 %v307, %v327
      %v330 = vmax.f32 %v308, %v328
      %v331 = vsub.f32 %v245, %v329
      %v332 = vsub.f32 %v246, %v330
      %v333 = vmax.f32 %v331, 0.0
      %v334 = vmax.f32 %v332, 0.0
      loop: start=0, step=1, limit=10
      $region33: #{dice_cl_ce_loss.3} parent=31 // loop_pre_header
        _
      $region34: #{dice_cl_ce_loss.3} parent=31 // loop_header
        %s336 = sphi 0, %s340
        %p337 = scmp.ge.s32.totalorder %s336, 10
        %v341 = vphi %v289, %v383
        %v342 = vphi %v290, %v384
        %v343 = vphi %v333, %v435
        %v344 = vphi %v334, %v436
      $region35: #{dice_cl_ce_loss.3} parent=31 // loop_header_branch
        %339 = sbr.rel (%p337) target = $region39
      $region36: #{dice_cl_ce_loss.3} parent=31 // loop_body
        %v347 = vrot.slane %v341, 7
        %v348 = vrot.slane %v342, 7
        %v349 = vsel %vm249, %v347, %v348
        %v352 = vsel %vm249, %v341, %v347
        %v353 = vrot.slane %v341, 1
        %v354 = vrot.slane %v342, 1
        %v355 = vsel %vm256, %v353, %v354
        %v358 = vsel %vm256, %v354, %v342
        %359 = vrot.lane.b32.xlu0 %v341, 1
        %v360 = vpop.permute.xlu0 %359
        %361 = vrot.lane.b32.xlu0 %v342, 1
        %v362 = vpop.permute.xlu0 %361
        %v365 = vsel %vm269, %v341, %v360
        %v366 = vsel %vm269, %v342, %v362
        %367 = vrot.lane.b32.xlu0 %v341, 127
        %v368 = vpop.permute.xlu0 %367
        %369 = vrot.lane.b32.xlu0 %v342, 127
        %v370 = vpop.permute.xlu0 %369
        %v373 = vsel %vm278, %v368, %v341
        %v374 = vsel %vm278, %v370, %v342
        %v375 = vmin.f32 %v352, %v355
        %v376 = vmin.f32 %v349, %v358
        %v377 = vmin.f32 %v341, %v375
        %v378 = vmin.f32 %v342, %v376
        %v379 = vmin.f32 %v365, %v373
        %v380 = vmin.f32 %v366, %v374
        %v381 = vmin.f32 %v341, %v379
        %v382 = vmin.f32 %v342, %v380
        %v383 = vmin.f32 %v377, %v381
        %v384 = vmin.f32 %v378, %v382
        %v387 = vrot.slane %v383, 7
        %v388 = vrot.slane %v384, 7
        %v389 = vsel %vm249, %v387, %v388
        %v392 = vsel %vm249, %v383, %v387
        %v393 = vrot.slane %v383, 1
        %v394 = vrot.slane %v384, 1
        %v395 = vsel %vm256, %v393, %v394
        %v398 = vsel %vm256, %v394, %v384
        %v399 = vmax.f32 %v392, %v395
        %v400 = vmax.f32 %v389, %v398
        %v401 = vmax.f32 %v383, %v399
        %v402 = vmax.f32 %v384, %v400
        %405 = vrot.lane.b32.xlu0 %v401, 1
        %v406 = vpop.permute.xlu0 %405
        %407 = vrot.lane.b32.xlu0 %v402, 1
        %v408 = vpop.permute.xlu0 %407
        %v411 = vsel %vm269, %v401, %v406
        %v412 = vsel %vm269, %v402, %v408
        %413 = vrot.lane.b32.xlu0 %v401, 127
        %v414 = vpop.permute.xlu0 %413
        %415 = vrot.lane.b32.xlu0 %v402, 127
        %v416 = vpop.permute.xlu0 %415
        %v419 = vsel %vm278, %v414, %v401
        %v420 = vsel %vm278, %v416, %v402
        %v421 = vmax.f32 %v411, %v419
        %v422 = vmax.f32 %v412, %v420
        %v423 = vmax.f32 %v401, %v421
        %v424 = vmax.f32 %v402, %v422
        %v425 = vsub.f32 %v341, %v423
        %v426 = vsub.f32 %v342, %v424
        %v427 = vmax.f32 %v425, 0.0
        %v428 = vmax.f32 %v426, 0.0
        %v429 = vmul.f32 %v343, %v427
        %v430 = vmul.f32 %v344, %v428
        %v431 = vsub.f32 %v427, %v429
        %v432 = vsub.f32 %v428, %v430
        %v433 = vmax.f32 %v431, 0.0
        %v434 = vmax.f32 %v432, 0.0
        %v435 = vadd.f32 %v343, %v433
        %v436 = vadd.f32 %v344, %v434
      $region37: #{dice_cl_ce_loss.3} parent=31 // loop_footer
        %s340 = sadd.s32 1, %s336
      $region38: #{dice_cl_ce_loss.3} parent=31 // loop_footer_branch
        %335 = sbr.rel target = $region34
      $region39: #{dice_cl_ce_loss.3} parent=31 // loop_exit
        _
      %v437 = vld [vmem:[%s231] sm:$0xff]
      %v438 = vld [vmem:[%s231 + $0x8] sm:$0xff]
      %vm439 = vcmp.eq.s32.totalorder %v437, 1
      %vm440 = vcmp.eq.s32.totalorder %v438, 1
      %v441 = vsel %vm439, 1, 0
      %v442 = vsel %vm440, 1, 0
      %v443 = vcvt.s32.f32 %v441
      %v444 = vcvt.s32.f32 %v442
      %v447 = vrot.slane %v443, 7
      %v448 = vrot.slane %v444, 7
      %v449 = vsel %vm249, %v447, %v448
      %v452 = vsel %vm249, %v443, %v447
      %v453 = vrot.slane %v443, 1
      %v454 = vrot.slane %v444, 1
      %v455 = vsel %vm256, %v453, %v454
      %v458 = vsel %vm256, %v454, %v444
      %459 = vrot.lane.b32.xlu0 %v443, 1
      %v460 = vpop.permute.xlu0 %459
      %461 = vrot.lane.b32.xlu0 %v444, 1
      %v462 = vpop.permute.xlu0 %461
      %v465 = vsel %vm269, %v443, %v460
      %v466 = vsel %vm269, %v444, %v462
      %467 = vrot.lane.b32.xlu0 %v443, 127
      %v468 = vpop.permute.xlu0 %467
      %469 = vrot.lane.b32.xlu0 %v444, 127
      %v470 = vpop.permute.xlu0 %469
      %v473 = vsel %vm278, %v468, %v443
      %v474 = vsel %vm278, %v470, %v444
      %v475 = vmin.f32 %v452, %v455
      %v476 = vmin.f32 %v449, %v458
      %v477 = vmin.f32 %v443, %v475
      %v478 = vmin.f32 %v444, %v476
      %v479 = vmin.f32 %v465, %v473
      %v480 = vmin.f32 %v466, %v474
      %v481 = vmin.f32 %v443, %v479
      %v482 = vmin.f32 %v444, %v480
      %v483 = vmin.f32 %v477, %v481
      %v484 = vmin.f32 %v478, %v482
      %v487 = vrot.slane %v483, 7
      %v488 = vrot.slane %v484, 7
      %v489 = vsel %vm249, %v487, %v488
      %v492 = vsel %vm249, %v483, %v487
      %v493 = vrot.slane %v483, 1
      %v494 = vrot.slane %v484, 1
      %v495 = vsel %vm256, %v493, %v494
      %v498 = vsel %vm256, %v494, %v484
      %v499 = vmax.f32 %v492, %v495
      %v500 = vmax.f32 %v489, %v498
      %v501 = vmax.f32 %v483, %v499
      %v502 = vmax.f32 %v484, %v500
      %505 = vrot.lane.b32.xlu0 %v501, 1
      %v506 = vpop.permute.xlu0 %505
      %507 = vrot.lane.b32.xlu0 %v502, 1
      %v508 = vpop.permute.xlu0 %507
      %v511 = vsel %vm269, %v501, %v506
      %v512 = vsel %vm269, %v502, %v508
      %513 = vrot.lane.b32.xlu0 %v501, 127
      %v514 = vpop.permute.xlu0 %513
      %515 = vrot.lane.b32.xlu0 %v502, 127
      %v516 = vpop.permute.xlu0 %515
      %v519 = vsel %vm278, %v514, %v501
      %v520 = vsel %vm278, %v516, %v502
      %v521 = vmax.f32 %v511, %v519
      %v522 = vmax.f32 %v512, %v520
      %v523 = vmax.f32 %v501, %v521
      %v524 = vmax.f32 %v502, %v522
      %v525 = vsub.f32 %v443, %v523
      %v526 = vsub.f32 %v444, %v524
      %v527 = vmax.f32 %v525, 0.0
      %v528 = vmax.f32 %v526, 0.0
      loop: start=0, step=1, limit=10
      $region40: #{dice_cl_ce_loss.3} parent=31 // loop_pre_header
        _
      $region41: #{dice_cl_ce_loss.3} parent=31 // loop_header
        %s530 = sphi 0, %s534
        %p531 = scmp.ge.s32.totalorder %s530, 10
        %v535 = vphi %v483, %v577
        %v536 = vphi %v484, %v578
        %v537 = vphi %v527, %v629
        %v538 = vphi %v528, %v630
      $region42: #{dice_cl_ce_loss.3} parent=31 // loop_header_branch
        %533 = sbr.rel (%p531) target = $region46
      $region43: #{dice_cl_ce_loss.3} parent=31 // loop_body
        %v541 = vrot.slane %v535, 7
        %v542 = vrot.slane %v536, 7
        %v543 = vsel %vm249, %v541, %v542
        %v546 = vsel %vm249, %v535, %v541
        %v547 = vrot.slane %v535, 1
        %v548 = vrot.slane %v536, 1
        %v549 = vsel %vm256, %v547, %v548
        %v552 = vsel %vm256, %v548, %v536
        %553 = vrot.lane.b32.xlu0 %v535, 1
        %v554 = vpop.permute.xlu0 %553
        %555 = vrot.lane.b32.xlu0 %v536, 1
        %v556 = vpop.permute.xlu0 %555
        %v559 = vsel %vm269, %v535, %v554
        %v560 = vsel %vm269, %v536, %v556
        %561 = vrot.lane.b32.xlu0 %v535, 127
        %v562 = vpop.permute.xlu0 %561
        %563 = vrot.lane.b32.xlu0 %v536, 127
        %v564 = vpop.permute.xlu0 %563
        %v567 = vsel %vm278, %v562, %v535
        %v568 = vsel %vm278, %v564, %v536
        %v569 = vmin.f32 %v546, %v549
        %v570 = vmin.f32 %v543, %v552
        %v571 = vmin.f32 %v535, %v569
        %v572 = vmin.f32 %v536, %v570
        %v573 = vmin.f32 %v559, %v567
        %v574 = vmin.f32 %v560, %v568
        %v575 = vmin.f32 %v535, %v573
        %v576 = vmin.f32 %v536, %v574
        %v577 = vmin.f32 %v571, %v575
        %v578 = vmin.f32 %v572, %v576
        %v581 = vrot.slane %v577, 7
        %v582 = vrot.slane %v578, 7
        %v583 = vsel %vm249, %v581, %v582
        %v586 = vsel %vm249, %v577, %v581
        %v587 = vrot.slane %v577, 1
        %v588 = vrot.slane %v578, 1
        %v589 = vsel %vm256, %v587, %v588
        %v592 = vsel %vm256, %v588, %v578
        %v593 = vmax.f32 %v586, %v589
        %v594 = vmax.f32 %v583, %v592
        %v595 = vmax.f32 %v577, %v593
        %v596 = vmax.f32 %v578, %v594
        %599 = vrot.lane.b32.xlu0 %v595, 1
        %v600 = vpop.permute.xlu0 %599
        %601 = vrot.lane.b32.xlu0 %v596, 1
        %v602 = vpop.permute.xlu0 %601
        %v605 = vsel %vm269, %v595, %v600
        %v606 = vsel %vm269, %v596, %v602
        %607 = vrot.lane.b32.xlu0 %v595, 127
        %v608 = vpop.permute.xlu0 %607
        %609 = vrot.lane.b32.xlu0 %v596, 127
        %v610 = vpop.permute.xlu0 %609
        %v613 = vsel %vm278, %v608, %v595
        %v614 = vsel %vm278, %v610, %v596
        %v615 = vmax.f32 %v605, %v613
        %v616 = vmax.f32 %v606, %v614
        %v617 = vmax.f32 %v595, %v615
        %v618 = vmax.f32 %v596, %v616
        %v619 = vsub.f32 %v535, %v617
        %v620 = vsub.f32 %v536, %v618
        %v621 = vmax.f32 %v619, 0.0
        %v622 = vmax.f32 %v620, 0.0
        %v623 = vmul.f32 %v537, %v621
        %v624 = vmul.f32 %v538, %v622
        %v625 = vsub.f32 %v621, %v623
        %v626 = vsub.f32 %v622, %v624
        %v627 = vmax.f32 %v625, 0.0
        %v628 = vmax.f32 %v626, 0.0
        %v629 = vadd.f32 %v537, %v627
        %v630 = vadd.f32 %v538, %v628
      $region44: #{dice_cl_ce_loss.3} parent=31 // loop_footer
        %s534 = sadd.s32 1, %s530
      $region45: #{dice_cl_ce_loss.3} parent=31 // loop_footer_branch
        %529 = sbr.rel target = $region41
      $region46: #{dice_cl_ce_loss.3} parent=31 // loop_exit
        _
      %v631 = vmul.f32 %v243, %v343
      %v632 = vmul.f32 %v244, %v344
      %vm633 = vcmask 130048
      %v634 = vsel %vm633, %v631, 0.0
      %v635 = vsel %vm633, %v632, 0.0
      %v636 = vadd.f32 %v634, %v635
      %637 = vadd.xlane.f32.xlu0 %v636
      %v638 = vpop.xlane.xlu0 %637
      %v639 = vrot.slane %v638, 4
      %v640 = vadd.f32 %v638, %v639
      %v641 = vrot.slane %v640, 2
      %v642 = vadd.f32 %v640, %v641
      %v643 = vrot.slane %v642, 1
      %v644 = vadd.f32 %v642, %v643
      %s645 = vtos %v644
      %v646 = vstv %s645
      %vm647 = vcmask 0
      %648 = vst.msk [vmem:[%s239] sm:$0x1] %vm647, %v646
      %v649 = vmul.f32 %v243, %v537
      %v650 = vmul.f32 %v244, %v538
      %v651 = vsel %vm633, %v649, 0.0
      %v652 = vsel %vm633, %v650, 0.0
      %v653 = vadd.f32 %v651, %v652
      %654 = vadd.xlane.f32.xlu0 %v653
      %v655 = vpop.xlane.xlu0 %654
      %v656 = vrot.slane %v655, 4
      %v657 = vadd.f32 %v655, %v656
      %v658 = vrot.slane %v657, 2
      %v659 = vadd.f32 %v657, %v658
      %v660 = vrot.slane %v659, 1
      %v661 = vadd.f32 %v659, %v660
      %s662 = vtos %v661
      %v663 = vstv %s662
      %664 = vst.msk [vmem:[%s242] sm:$0x1] %vm647, %v663
      %p665 = scmp.lt.s32.totalorder %s16, 1
      %s666 = scalar_select %p665, %s16, 1
      %s667 = scalar_lea.vmem %s3, %s666
      %p668 = scmp.lt.s32.totalorder %s16, 1
      %s669 = scalar_select %p668, %s16, 1
      %s670 = scalar_lea.vmem %s4, %s669
      // Predicated region
      $region47: #{dice_cl_ce_loss.3} parent=31 // pred_check
        %p671 = pneg %p112
      $region48: #{dice_cl_ce_loss.3} parent=31 // pred_check_branch
        %673 = sbr.rel (%p671) target = $region50
      $region49: #{dice_cl_ce_loss.3} parent=31 // pred_region
        _
      $region50: #{dice_cl_ce_loss.3} parent=31 // pred_fallthru
        _
      // Predicated region
      $region51: #{dice_cl_ce_loss.3} parent=31 // pred_check
        %p674 = pneg %p138
      $region52: #{dice_cl_ce_loss.3} parent=31 // pred_check_branch
        %676 = sbr.rel (%p674) target = $region54
      $region53: #{dice_cl_ce_loss.3} parent=31 // pred_region
        _
      $region54: #{dice_cl_ce_loss.3} parent=31 // pred_fallthru
        _
    $region32: #{dice_cl_ce_loss.3} parent=5 // pred_fallthru
      _
    %p677 = scmp.le.s32.totalorder 2, %s11
    // Predicated region
    $region55: #{dice_cl_ce_loss.3} parent=5 // pred_check
      %p678 = pneg %p677
    $region56: #{dice_cl_ce_loss.3} parent=5 // pred_check_branch
      %680 = sbr.rel (%p678) target = $region58
    $region57: #{dice_cl_ce_loss.3} parent=5 // pred_region
      %s681 = ssub.s32 %s11, 2
      // Predicated region
      $region59: #{dice_cl_ce_loss.3} parent=57 // pred_check
        %p682 = pneg %p118
      $region60: #{dice_cl_ce_loss.3} parent=57 // pred_check_branch
        %684 = sbr.rel (%p682) target = $region62
      $region61: #{dice_cl_ce_loss.3} parent=57 // pred_region
        %p685 = scmp.lt.s32.totalorder %s17, 1
        %s686 = scalar_select %p685, %s17, 1
        %s687 = scalar_lea.vmem %s3, %s686
      $region62: #{dice_cl_ce_loss.3} parent=57 // pred_fallthru
        _
      // Predicated region
      $region63: #{dice_cl_ce_loss.3} parent=57 // pred_check
        %p688 = pneg %p144
      $region64: #{dice_cl_ce_loss.3} parent=57 // pred_check_branch
        %690 = sbr.rel (%p688) target = $region66
      $region65: #{dice_cl_ce_loss.3} parent=57 // pred_region
        %p691 = scmp.lt.s32.totalorder %s17, 1
        %s692 = scalar_select %p691, %s17, 1
        %s693 = scalar_lea.vmem %s4, %s692
      $region66: #{dice_cl_ce_loss.3} parent=57 // pred_fallthru
        _
    $region58: #{dice_cl_ce_loss.3} parent=5 // pred_fallthru
      _
  $region6: #{dice_cl_ce_loss.3} parent=0 // loop_footer
    %s15 = sadd.s32 1, %s11
  $region7: #{dice_cl_ce_loss.3} parent=0 // loop_footer_branch
    %10 = sbr.rel target = $region3
  $region8: #{dice_cl_ce_loss.3} parent=0 // loop_exit
    _

</llo_original>
